<compile_context>
chip_gen: v7x
topology: tpu7x:2x2x1
jax: 0.10.0
libtpu: 0.0.40
codegen_flags: <defaults>
</compile_context>

<pallas_src>
import functools

import jax
import jax.numpy as jnp
from jax import lax
from jax.experimental import pallas as pl
from jax.experimental.pallas import tpu as pltpu


def _self_attention_kernel(x_ref, wq_ref, bq_ref, wk_ref, bk_ref,
                           wv_ref, bv_ref, wo_ref, bo_ref, o_ref,
                           *, num_heads, head_dim, block_batch, seq_len):
    Bt, S = block_batch, seq_len
    E = num_heads * head_dim
    N = Bt * S

    # Contract dim 1 of both operands: y[n, o] = sum_e x[n, e] * W[o, e]  (== x @ W.T)
    # -> no in-kernel transpose of the E x E weights (no XLU relayout per grid step).
    dn = (((1,), (1,)), ((), ()))

    # (Bt, S, E) -> (Bt*S, E): leading-dim merge only (lane/sublane layout untouched).
    x = x_ref[...].reshape(N, E).astype(wq_ref.dtype)

    q = lax.dot_general(x, wq_ref[...], dn, preferred_element_type=jnp.float32) + bq_ref[...]
    k = lax.dot_general(x, wk_ref[...], dn, preferred_element_type=jnp.float32) + bk_ref[...]
    v = lax.dot_general(x, wv_ref[...], dn, preferred_element_type=jnp.float32) + bv_ref[...]

    # Fold the 1/sqrt(D) softmax scale into Q once (S*E multiplies, not S*S per head).
    q = q * (1.0 / (head_dim ** 0.5))

    q = q.reshape(Bt, S, E)
    k = k.reshape(Bt, S, E)
    v = v.reshape(Bt, S, E)

    wo = wo_ref[...]                     # (E, E), PyTorch (out, in) layout
    acc = jnp.zeros((N, E), jnp.float32)

    # Static unroll over heads (LLO scheduler sees the whole body); every per-head op is
    # batched over Bt.  Contraction is always on head_dim -> no K transpose, and the
    # per-head out-proj accumulation removes the head concatenate entirely.
    for h in range(num_heads):
        lo = h * head_dim
        qh = q[:, :, lo:lo + head_dim]   # (Bt, S, D)
        kh = k[:, :, lo:lo + head_dim]   # (Bt, S, D)
        vh = v[:, :, lo:lo + head_dim]   # (Bt, S, D)

        # scores: contract over D (minor dim of both) -> (Bt, S, S), f32 on the MXU.
        e = jnp.einsum('bqd,bkd->bqk', qh, kh, preferred_element_type=jnp.float32)
        e = e - jnp.max(e, axis=-1, keepdims=True)            # stable softmax (f32)
        p = jnp.exp(e)                                        # EUP
        # approximate reciprocal also runs on the EUP slot -> nearly free next to exp
        p = p * pl.reciprocal(jnp.sum(p, axis=-1, keepdims=True), approx=True)

        oh = jnp.einsum('bqk,bkd->bqd', p, vh, preferred_element_type=jnp.float32)

        # Accumulate this head directly into the output projection:
        #   acc += oh @ Wo[:, lo:lo+D].T   (contract over D; no concat, no transpose)
        acc = acc + lax.dot_general(oh.reshape(N, head_dim).astype(wo.dtype),
                                    wo[:, lo:lo + head_dim], dn,
                                    preferred_element_type=jnp.float32)

    out = acc + bo_ref[...]
    # For real configs keep E a multiple of 128 so this store is lane-dense (unmasked vst).
    o_ref[...] = out.reshape(Bt, S, E).astype(o_ref.dtype)


def self_attention_pallas(x, params, num_heads, *, block_batch=None, matmul_dtype=None):
    """x: (B, S, E). params: dict of wq, bq, wk, bk, wv, bv, wo, bo (PyTorch layout).

    matmul_dtype: set to jnp.bfloat16 on v6e/v7x to run the MXU at bf16 peak (softmax,
    bias math and accumulation stay in f32).  Default keeps the input dtype for parity.
    """
    B, S, E = x.shape
    if E % num_heads != 0:
        raise ValueError("Embedding dimension must be divisible by number of heads")
    head_dim = E // num_heads

    if block_batch is None:
        # Target >= ~256 projection rows per grid step (fills a 256x256 MXU tile on
        # v6e/v7x; >=128 already saturates v5e) ...
        bb = max(1, min(B, 256 // max(S, 1)))
        # ... but cap the per-block f32 working set (q,k,v,acc, per-head scores and the
        # in/out tiles) so large-S configs stay well inside scoped VMEM on v7x (64 MiB).
        def _blk_bytes(n):
            return 4 * n * (6 * S * E + S * S)
        while bb > 1 and _blk_bytes(bb) > (8 << 20):
            bb -= 1
        while B % bb:
            bb -= 1
        # Keep >= 2 grid steps when B >= 2 so both v7x TensorCores get work via the
        # "parallel" grid axis.
        if B >= 2 and B // bb < 2:
            bb = max(1, bb // 2)
            while B % bb:
                bb -= 1
        block_batch = bb
    grid_b = B // block_batch

    w_dtype = matmul_dtype if matmul_dtype is not None else x.dtype
    wq = params["wq"].astype(w_dtype)
    wk = params["wk"].astype(w_dtype)
    wv = params["wv"].astype(w_dtype)
    wo = params["wo"].astype(w_dtype)
    # Biases as (1, E) f32 so they broadcast over the flattened (Bt*S, E) rows.
    bq = params["bq"].reshape(1, E).astype(jnp.float32)
    bk = params["bk"].reshape(1, E).astype(jnp.float32)
    bv = params["bv"].reshape(1, E).astype(jnp.float32)
    bo = params["bo"].reshape(1, E).astype(jnp.float32)

    kernel = functools.partial(_self_attention_kernel,
                               num_heads=num_heads, head_dim=head_dim,
                               block_batch=block_batch, seq_len=S)

    # Weights/biases have constant index_maps -> resident across the grid (DMA'd once).
    w_spec = pl.BlockSpec((E, E), lambda b: (0, 0))
    b_spec = pl.BlockSpec((1, E), lambda b: (0, 0))
    x_spec = pl.BlockSpec((block_batch, S, E), lambda b: (b, 0, 0))

    # Explicit scoped-VMEM budget: resident weights (double-buffered by the pipeline) +
    # in/out blocks + compiler scratch headroom; clamped to 48 MiB (< v7x 64 MiB VMEM).
    w_bytes = 4 * E * E * jnp.dtype(w_dtype).itemsize
    io_bytes = 4 * block_batch * S * E * jnp.dtype(x.dtype).itemsize
    scratch_bytes = 4 * block_batch * (6 * S * E + S * S)
    vmem_limit = int(min(max(32 << 20, 2 * (2 * w_bytes + io_bytes) + 2 * scratch_bytes),
                         48 << 20))

    # Advisory cost hint for the XLA scheduler around the custom call.
    flops = 8 * B * S * E * E + 4 * B * S * S * E
    cost = pl.CostEstimate(
        flops=flops,
        transcendentals=B * num_heads * S * S,
        bytes_accessed=2 * B * S * E * x.dtype.itemsize + 4 * E * E * jnp.dtype(w_dtype).itemsize,
    )

    return pl.pallas_call(
        kernel,
        out_shape=jax.ShapeDtypeStruct((B, S, E), x.dtype),
        grid_spec=pltpu.PrefetchScalarGridSpec(
            num_scalar_prefetch=0,
            grid=(grid_b,),
            in_specs=[
                x_spec,             # x
                w_spec, b_spec,     # query
                w_spec, b_spec,     # key
                w_spec, b_spec,     # value
                w_spec, b_spec,     # fc_out
            ],
            out_specs=x_spec,
        ),
        compiler_params=pltpu.CompilerParams(
            dimension_semantics=("parallel",),
            vmem_limit_bytes=vmem_limit,
        ),
        cost_estimate=cost,
    )(x, wq, bq, wk, bk, wv, bv, wo, bo)


def self_attention_ref(x, params, num_heads):
    """Pure-JAX reference mirroring the PyTorch forward."""
    B, S, E = x.shape
    D = E // num_heads
    q = x @ params["wq"].T + params["bq"]
    k = x @ params["wk"].T + params["bk"]
    v = x @ params["wv"].T + params["bv"]
    q = q.reshape(B, S, num_heads, D).transpose(0, 2, 1, 3)
    k = k.reshape(B, S, num_heads, D).transpose(0, 2, 1, 3)
    v = v.reshape(B, S, num_heads, D).transpose(0, 2, 1, 3)
    energy = jnp.einsum("bhqd,bhkd->bhqk", q, k) / (D ** 0.5)
    attn = jax.nn.softmax(energy, axis=-1)
    out = jnp.einsum("bhqk,bhkd->bhqd", attn, v)
    out = out.transpose(0, 2, 1, 3).reshape(B, S, E)
    return out @ params["wo"].T + params["bo"]


if __name__ == "__main__":
    # Small shapes consistent with the module: (batch=2, seq=8, embed_dim=32), 4 heads.
    B, S, E, H = 2, 8, 32, 4

    key = jax.random.PRNGKey(0)
    kx, kq, kk, kv, ko = jax.random.split(key, 5)

    x = jax.random.normal(kx, (B, S, E), dtype=jnp.float32)

    # Deterministic init matching the PyTorch module: weights ~ N(0, 10^2), biases = 0.
    params = {
        "wq": 10.0 * jax.random.normal(kq, (E, E), dtype=jnp.float32),
        "wk": 10.0 * jax.random.normal(kk, (E, E), dtype=jnp.float32),
        "wv": 10.0 * jax.random.normal(kv, (E, E), dtype=jnp.float32),
        "wo": 10.0 * jax.random.normal(ko, (E, E), dtype=jnp.float32),
        "bq": jnp.zeros((E,), dtype=jnp.float32),
        "bk": jnp.zeros((E,), dtype=jnp.float32),
        "bv": jnp.zeros((E,), dtype=jnp.float32),
        "bo": jnp.zeros((E,), dtype=jnp.float32),
    }

    out = jax.block_until_ready(self_attention_pallas(x, params, num_heads=H))
    ref = self_attention_ref(x, params, num_heads=H)

    assert out.shape == (B, S, E)
    # Tolerance accounts for the EUP approximate reciprocal in the softmax normalization.
    rel_err = float(jnp.max(jnp.abs(out - ref)) / (jnp.max(jnp.abs(ref)) + 1e-6))
    assert rel_err < 1e-2, f"mismatch vs JAX reference (rel_err={rel_err})"

    # TODO(synk): nn.Dropout is instantiated in __init__ but never used in forward(); omitted.
    print("KERNEL_OK")
</pallas_src>

<mosaic_0001>
module attributes {stable_mosaic.version = 11 : i64} {
  func.func @_self_attention_kernel(%arg0: i32, %arg1: memref<1x8x32xf32, #tpu.memory_space<vmem>>, %arg2: memref<32x32xf32, #tpu.memory_space<vmem>>, %arg3: memref<1x32xf32, #tpu.memory_space<vmem>>, %arg4: memref<32x32xf32, #tpu.memory_space<vmem>>, %arg5: memref<1x32xf32, #tpu.memory_space<vmem>>, %arg6: memref<32x32xf32, #tpu.memory_space<vmem>>, %arg7: memref<1x32xf32, #tpu.memory_space<vmem>>, %arg8: memref<32x32xf32, #tpu.memory_space<vmem>>, %arg9: memref<1x32xf32, #tpu.memory_space<vmem>>, %arg10: memref<1x8x32xf32, #tpu.memory_space<vmem>>) attributes {dimension_semantics = [#tpu.dimension_semantics<parallel>], iteration_bounds = array<i64: 2>, scalar_prefetch = 0 : i64, scratch_operands = 0 : i64, tpu.core_type = #tpu.core_type<tc>, window_params = [{transform_indices = @transform_0, window_bounds = array<i64: 1, 8, 32>}, {pipeline_mode = #tpu.pipeline_mode<synchronous>, transform_indices = @transform_1, window_bounds = array<i64: 32, 32>}, {pipeline_mode = #tpu.pipeline_mode<synchronous>, transform_indices = @transform_2, window_bounds = array<i64: 1, 32>}, {pipeline_mode = #tpu.pipeline_mode<synchronous>, transform_indices = @transform_3, window_bounds = array<i64: 32, 32>}, {pipeline_mode = #tpu.pipeline_mode<synchronous>, transform_indices = @transform_4, window_bounds = array<i64: 1, 32>}, {pipeline_mode = #tpu.pipeline_mode<synchronous>, transform_indices = @transform_5, window_bounds = array<i64: 32, 32>}, {pipeline_mode = #tpu.pipeline_mode<synchronous>, transform_indices = @transform_6, window_bounds = array<i64: 1, 32>}, {pipeline_mode = #tpu.pipeline_mode<synchronous>, transform_indices = @transform_7, window_bounds = array<i64: 32, 32>}, {pipeline_mode = #tpu.pipeline_mode<synchronous>, transform_indices = @transform_8, window_bounds = array<i64: 1, 32>}, {transform_indices = @transform_9, window_bounds = array<i64: 1, 8, 32>}]} {
    %c0 = arith.constant 0 : index
    %c0_0 = arith.constant 0 : index
    %c0_1 = arith.constant 0 : index
    %0 = vector.load %arg1[%c0, %c0_0, %c0_1] : memref<1x8x32xf32, #tpu.memory_space<vmem>>, vector<1x8x32xf32>
    %1 = vector.shape_cast %0 : vector<1x8x32xf32> to vector<8x32xf32>
    %c0_2 = arith.constant 0 : index
    %c0_3 = arith.constant 0 : index
    %2 = vector.load %arg2[%c0_2, %c0_3] : memref<32x32xf32, #tpu.memory_space<vmem>>, vector<32x32xf32>
    %cst = arith.constant dense<0.000000e+00> : vector<8x32xf32>
    %3 = tpu.matmul %1, %2, %cst {dimension_numbers = #tpu.dot_dimension_numbers<[1], [1], [0], [0], [0, 0, 1, 0], [], []>} : vector<8x32xf32>, vector<32x32xf32>, vector<8x32xf32> -> vector<8x32xf32>
    %c0_4 = arith.constant 0 : index
    %c0_5 = arith.constant 0 : index
    %4 = vector.load %arg3[%c0_4, %c0_5] : memref<1x32xf32, #tpu.memory_space<vmem>>, vector<1x32xf32>
    %5 = vector.broadcast %4 : vector<1x32xf32> to vector<8x32xf32>
    %6 = arith.addf %3, %5 : vector<8x32xf32>
    %c0_6 = arith.constant 0 : index
    %c0_7 = arith.constant 0 : index
    %7 = vector.load %arg4[%c0_6, %c0_7] : memref<32x32xf32, #tpu.memory_space<vmem>>, vector<32x32xf32>
    %cst_8 = arith.constant dense<0.000000e+00> : vector<8x32xf32>
    %8 = tpu.matmul %1, %7, %cst_8 {dimension_numbers = #tpu.dot_dimension_numbers<[1], [1], [0], [0], [0, 0, 1, 0], [], []>} : vector<8x32xf32>, vector<32x32xf32>, vector<8x32xf32> -> vector<8x32xf32>
    %c0_9 = arith.constant 0 : index
    %c0_10 = arith.constant 0 : index
    %9 = vector.load %arg5[%c0_9, %c0_10] : memref<1x32xf32, #tpu.memory_space<vmem>>, vector<1x32xf32>
    %10 = vector.broadcast %9 : vector<1x32xf32> to vector<8x32xf32>
    %11 = arith.addf %8, %10 : vector<8x32xf32>
    %c0_11 = arith.constant 0 : index
    %c0_12 = arith.constant 0 : index
    %12 = vector.load %arg6[%c0_11, %c0_12] : memref<32x32xf32, #tpu.memory_space<vmem>>, vector<32x32xf32>
    %cst_13 = arith.constant dense<0.000000e+00> : vector<8x32xf32>
    %13 = tpu.matmul %1, %12, %cst_13 {dimension_numbers = #tpu.dot_dimension_numbers<[1], [1], [0], [0], [0, 0, 1, 0], [], []>} : vector<8x32xf32>, vector<32x32xf32>, vector<8x32xf32> -> vector<8x32xf32>
    %c0_14 = arith.constant 0 : index
    %c0_15 = arith.constant 0 : index
    %14 = vector.load %arg7[%c0_14, %c0_15] : memref<1x32xf32, #tpu.memory_space<vmem>>, vector<1x32xf32>
    %15 = vector.broadcast %14 : vector<1x32xf32> to vector<8x32xf32>
    %16 = arith.addf %13, %15 : vector<8x32xf32>
    %cst_16 = arith.constant 0.353553385 : f32
    %17 = vector.broadcast %cst_16 : f32 to vector<8x32xf32>
    %18 = arith.mulf %6, %17 : vector<8x32xf32>
    %19 = vector.shape_cast %18 : vector<8x32xf32> to vector<1x8x32xf32>
    %20 = vector.shape_cast %11 : vector<8x32xf32> to vector<1x8x32xf32>
    %21 = vector.shape_cast %16 : vector<8x32xf32> to vector<1x8x32xf32>
    %c0_17 = arith.constant 0 : index
    %c0_18 = arith.constant 0 : index
    %22 = vector.load %arg8[%c0_17, %c0_18] : memref<32x32xf32, #tpu.memory_space<vmem>>, vector<32x32xf32>
    %cst_19 = arith.constant 0.000000e+00 : f32
    %23 = vector.broadcast %cst_19 : f32 to vector<8x32xf32>
    %24 = vector.extract_strided_slice %19 {offsets = [0, 0, 0], sizes = [1, 8, 8], strides = [1, 1, 1]} : vector<1x8x32xf32> to vector<1x8x8xf32>
    %25 = vector.extract_strided_slice %20 {offsets = [0, 0, 0], sizes = [1, 8, 8], strides = [1, 1, 1]} : vector<1x8x32xf32> to vector<1x8x8xf32>
    %26 = vector.extract_strided_slice %21 {offsets = [0, 0, 0], sizes = [1, 8, 8], strides = [1, 1, 1]} : vector<1x8x32xf32> to vector<1x8x8xf32>
    "tpu.trace_start"() <{level = 10 : i32, message = "bqd,bkd->bqk"}> : () -> ()
    %cst_20 = arith.constant dense<0.000000e+00> : vector<1x8x8xf32>
    %27 = tpu.matmul %24, %25, %cst_20 {dimension_numbers = #tpu.dot_dimension_numbers<[2], [2], [1], [1], [0, 0, 0, 1, 1, 1], [0], [0]>} : vector<1x8x8xf32>, vector<1x8x8xf32>, vector<1x8x8xf32> -> vector<1x8x8xf32>
    "tpu.trace_stop"() : () -> ()
    %cst_21 = arith.constant dense<0xFF800000> : vector<1x8xf32>
    %28 = vector.multi_reduction <maximumf>, %27, %cst_21 [2] : vector<1x8x8xf32> to vector<1x8xf32>
    %29 = vector.shape_cast %28 : vector<1x8xf32> to vector<1x8x1xf32>
    %30 = vector.broadcast %29 : vector<1x8x1xf32> to vector<1x8x8xf32>
    %31 = arith.subf %27, %30 : vector<1x8x8xf32>
    %32 = math.exp %31 : vector<1x8x8xf32>
    %cst_22 = arith.constant dense<0.000000e+00> : vector<1x8xf32>
    %33 = vector.multi_reduction <add>, %32, %cst_22 [2] : vector<1x8x8xf32> to vector<1x8xf32>
    %34 = vector.shape_cast %33 : vector<1x8xf32> to vector<1x8x1xf32>
    %35 = tpu.reciprocal %34 {approx = true} : vector<1x8x1xf32> -> vector<1x8x1xf32>
    %36 = vector.broadcast %35 : vector<1x8x1xf32> to vector<1x8x8xf32>
    %37 = arith.mulf %32, %36 : vector<1x8x8xf32>
    "tpu.trace_start"() <{level = 10 : i32, message = "bqk,bkd->bqd"}> : () -> ()
    %cst_23 = arith.constant dense<0.000000e+00> : vector<1x8x8xf32>
    %38 = tpu.matmul %37, %26, %cst_23 {dimension_numbers = #tpu.dot_dimension_numbers<[2], [1], [1], [2], [0, 0, 0, 1, 1, 2], [0], [0]>} : vector<1x8x8xf32>, vector<1x8x8xf32>, vector<1x8x8xf32> -> vector<1x8x8xf32>
    "tpu.trace_stop"() : () -> ()
    %39 = vector.shape_cast %38 : vector<1x8x8xf32> to vector<8x8xf32>
    %40 = vector.extract_strided_slice %22 {offsets = [0, 0], sizes = [32, 8], strides = [1, 1]} : vector<32x32xf32> to vector<32x8xf32>
    %cst_24 = arith.constant dense<0.000000e+00> : vector<8x32xf32>
    %41 = tpu.matmul %39, %40, %cst_24 {dimension_numbers = #tpu.dot_dimension_numbers<[1], [1], [0], [0], [0, 0, 1, 0], [], []>} : vector<8x8xf32>, vector<32x8xf32>, vector<8x32xf32> -> vector<8x32xf32>
    %42 = arith.addf %23, %41 : vector<8x32xf32>
    %43 = vector.extract_strided_slice %19 {offsets = [0, 0, 8], sizes = [1, 8, 8], strides = [1, 1, 1]} : vector<1x8x32xf32> to vector<1x8x8xf32>
    %44 = vector.extract_strided_slice %20 {offsets = [0, 0, 8], sizes = [1, 8, 8], strides = [1, 1, 1]} : vector<1x8x32xf32> to vector<1x8x8xf32>
    %45 = vector.extract_strided_slice %21 {offsets = [0, 0, 8], sizes = [1, 8, 8], strides = [1, 1, 1]} : vector<1x8x32xf32> to vector<1x8x8xf32>
    "tpu.trace_start"() <{level = 10 : i32, message = "bqd,bkd->bqk"}> : () -> ()
    %cst_25 = arith.constant dense<0.000000e+00> : vector<1x8x8xf32>
    %46 = tpu.matmul %43, %44, %cst_25 {dimension_numbers = #tpu.dot_dimension_numbers<[2], [2], [1], [1], [0, 0, 0, 1, 1, 1], [0], [0]>} : vector<1x8x8xf32>, vector<1x8x8xf32>, vector<1x8x8xf32> -> vector<1x8x8xf32>
    "tpu.trace_stop"() : () -> ()
    %cst_26 = arith.constant dense<0xFF800000> : vector<1x8xf32>
    %47 = vector.multi_reduction <maximumf>, %46, %cst_26 [2] : vector<1x8x8xf32> to vector<1x8xf32>
    %48 = vector.shape_cast %47 : vector<1x8xf32> to vector<1x8x1xf32>
    %49 = vector.broadcast %48 : vector<1x8x1xf32> to vector<1x8x8xf32>
    %50 = arith.subf %46, %49 : vector<1x8x8xf32>
    %51 = math.exp %50 : vector<1x8x8xf32>
    %cst_27 = arith.constant dense<0.000000e+00> : vector<1x8xf32>
    %52 = vector.multi_reduction <add>, %51, %cst_27 [2] : vector<1x8x8xf32> to vector<1x8xf32>
    %53 = vector.shape_cast %52 : vector<1x8xf32> to vector<1x8x1xf32>
    %54 = tpu.reciprocal %53 {approx = true} : vector<1x8x1xf32> -> vector<1x8x1xf32>
    %55 = vector.broadcast %54 : vector<1x8x1xf32> to vector<1x8x8xf32>
    %56 = arith.mulf %51, %55 : vector<1x8x8xf32>
    "tpu.trace_start"() <{level = 10 : i32, message = "bqk,bkd->bqd"}> : () -> ()
    %cst_28 = arith.constant dense<0.000000e+00> : vector<1x8x8xf32>
    %57 = tpu.matmul %56, %45, %cst_28 {dimension_numbers = #tpu.dot_dimension_numbers<[2], [1], [1], [2], [0, 0, 0, 1, 1, 2], [0], [0]>} : vector<1x8x8xf32>, vector<1x8x8xf32>, vector<1x8x8xf32> -> vector<1x8x8xf32>
    "tpu.trace_stop"() : () -> ()
    %58 = vector.shape_cast %57 : vector<1x8x8xf32> to vector<8x8xf32>
    %59 = vector.extract_strided_slice %22 {offsets = [0, 8], sizes = [32, 8], strides = [1, 1]} : vector<32x32xf32> to vector<32x8xf32>
    %cst_29 = arith.constant dense<0.000000e+00> : vector<8x32xf32>
    %60 = tpu.matmul %58, %59, %cst_29 {dimension_numbers = #tpu.dot_dimension_numbers<[1], [1], [0], [0], [0, 0, 1, 0], [], []>} : vector<8x8xf32>, vector<32x8xf32>, vector<8x32xf32> -> vector<8x32xf32>
    %61 = arith.addf %42, %60 : vector<8x32xf32>
    %62 = vector.extract_strided_slice %19 {offsets = [0, 0, 16], sizes = [1, 8, 8], strides = [1, 1, 1]} : vector<1x8x32xf32> to vector<1x8x8xf32>
    %63 = vector.extract_strided_slice %20 {offsets = [0, 0, 16], sizes = [1, 8, 8], strides = [1, 1, 1]} : vector<1x8x32xf32> to vector<1x8x8xf32>
    %64 = vector.extract_strided_slice %21 {offsets = [0, 0, 16], sizes = [1, 8, 8], strides = [1, 1, 1]} : vector<1x8x32xf32> to vector<1x8x8xf32>
    "tpu.trace_start"() <{level = 10 : i32, message = "bqd,bkd->bqk"}> : () -> ()
    %cst_30 = arith.constant dense<0.000000e+00> : vector<1x8x8xf32>
    %65 = tpu.matmul %62, %63, %cst_30 {dimension_numbers = #tpu.dot_dimension_numbers<[2], [2], [1], [1], [0, 0, 0, 1, 1, 1], [0], [0]>} : vector<1x8x8xf32>, vector<1x8x8xf32>, vector<1x8x8xf32> -> vector<1x8x8xf32>
    "tpu.trace_stop"() : () -> ()
    %cst_31 = arith.constant dense<0xFF800000> : vector<1x8xf32>
    %66 = vector.multi_reduction <maximumf>, %65, %cst_31 [2] : vector<1x8x8xf32> to vector<1x8xf32>
    %67 = vector.shape_cast %66 : vector<1x8xf32> to vector<1x8x1xf32>
    %68 = vector.broadcast %67 : vector<1x8x1xf32> to vector<1x8x8xf32>
    %69 = arith.subf %65, %68 : vector<1x8x8xf32>
    %70 = math.exp %69 : vector<1x8x8xf32>
    %cst_32 = arith.constant dense<0.000000e+00> : vector<1x8xf32>
    %71 = vector.multi_reduction <add>, %70, %cst_32 [2] : vector<1x8x8xf32> to vector<1x8xf32>
    %72 = vector.shape_cast %71 : vector<1x8xf32> to vector<1x8x1xf32>
    %73 = tpu.reciprocal %72 {approx = true} : vector<1x8x1xf32> -> vector<1x8x1xf32>
    %74 = vector.broadcast %73 : vector<1x8x1xf32> to vector<1x8x8xf32>
    %75 = arith.mulf %70, %74 : vector<1x8x8xf32>
    "tpu.trace_start"() <{level = 10 : i32, message = "bqk,bkd->bqd"}> : () -> ()
    %cst_33 = arith.constant dense<0.000000e+00> : vector<1x8x8xf32>
    %76 = tpu.matmul %75, %64, %cst_33 {dimension_numbers = #tpu.dot_dimension_numbers<[2], [1], [1], [2], [0, 0, 0, 1, 1, 2], [0], [0]>} : vector<1x8x8xf32>, vector<1x8x8xf32>, vector<1x8x8xf32> -> vector<1x8x8xf32>
    "tpu.trace_stop"() : () -> ()
    %77 = vector.shape_cast %76 : vector<1x8x8xf32> to vector<8x8xf32>
    %78 = vector.extract_strided_slice %22 {offsets = [0, 16], sizes = [32, 8], strides = [1, 1]} : vector<32x32xf32> to vector<32x8xf32>
    %cst_34 = arith.constant dense<0.000000e+00> : vector<8x32xf32>
    %79 = tpu.matmul %77, %78, %cst_34 {dimension_numbers = #tpu.dot_dimension_numbers<[1], [1], [0], [0], [0, 0, 1, 0], [], []>} : vector<8x8xf32>, vector<32x8xf32>, vector<8x32xf32> -> vector<8x32xf32>
    %80 = arith.addf %61, %79 : vector<8x32xf32>
    %81 = vector.extract_strided_slice %19 {offsets = [0, 0, 24], sizes = [1, 8, 8], strides = [1, 1, 1]} : vector<1x8x32xf32> to vector<1x8x8xf32>
    %82 = vector.extract_strided_slice %20 {offsets = [0, 0, 24], sizes = [1, 8, 8], strides = [1, 1, 1]} : vector<1x8x32xf32> to vector<1x8x8xf32>
    %83 = vector.extract_strided_slice %21 {offsets = [0, 0, 24], sizes = [1, 8, 8], strides = [1, 1, 1]} : vector<1x8x32xf32> to vector<1x8x8xf32>
    "tpu.trace_start"() <{level = 10 : i32, message = "bqd,bkd->bqk"}> : () -> ()
    %cst_35 = arith.constant dense<0.000000e+00> : vector<1x8x8xf32>
    %84 = tpu.matmul %81, %82, %cst_35 {dimension_numbers = #tpu.dot_dimension_numbers<[2], [2], [1], [1], [0, 0, 0, 1, 1, 1], [0], [0]>} : vector<1x8x8xf32>, vector<1x8x8xf32>, vector<1x8x8xf32> -> vector<1x8x8xf32>
    "tpu.trace_stop"() : () -> ()
    %cst_36 = arith.constant dense<0xFF800000> : vector<1x8xf32>
    %85 = vector.multi_reduction <maximumf>, %84, %cst_36 [2] : vector<1x8x8xf32> to vector<1x8xf32>
    %86 = vector.shape_cast %85 : vector<1x8xf32> to vector<1x8x1xf32>
    %87 = vector.broadcast %86 : vector<1x8x1xf32> to vector<1x8x8xf32>
    %88 = arith.subf %84, %87 : vector<1x8x8xf32>
    %89 = math.exp %88 : vector<1x8x8xf32>
    %cst_37 = arith.constant dense<0.000000e+00> : vector<1x8xf32>
    %90 = vector.multi_reduction <add>, %89, %cst_37 [2] : vector<1x8x8xf32> to vector<1x8xf32>
    %91 = vector.shape_cast %90 : vector<1x8xf32> to vector<1x8x1xf32>
    %92 = tpu.reciprocal %91 {approx = true} : vector<1x8x1xf32> -> vector<1x8x1xf32>
    %93 = vector.broadcast %92 : vector<1x8x1xf32> to vector<1x8x8xf32>
    %94 = arith.mulf %89, %93 : vector<1x8x8xf32>
    "tpu.trace_start"() <{level = 10 : i32, message = "bqk,bkd->bqd"}> : () -> ()
    %cst_38 = arith.constant dense<0.000000e+00> : vector<1x8x8xf32>
    %95 = tpu.matmul %94, %83, %cst_38 {dimension_numbers = #tpu.dot_dimension_numbers<[2], [1], [1], [2], [0, 0, 0, 1, 1, 2], [0], [0]>} : vector<1x8x8xf32>, vector<1x8x8xf32>, vector<1x8x8xf32> -> vector<1x8x8xf32>
    "tpu.trace_stop"() : () -> ()
    %96 = vector.shape_cast %95 : vector<1x8x8xf32> to vector<8x8xf32>
    %97 = vector.extract_strided_slice %22 {offsets = [0, 24], sizes = [32, 8], strides = [1, 1]} : vector<32x32xf32> to vector<32x8xf32>
    %cst_39 = arith.constant dense<0.000000e+00> : vector<8x32xf32>
    %98 = tpu.matmul %96, %97, %cst_39 {dimension_numbers = #tpu.dot_dimension_numbers<[1], [1], [0], [0], [0, 0, 1, 0], [], []>} : vector<8x8xf32>, vector<32x8xf32>, vector<8x32xf32> -> vector<8x32xf32>
    %99 = arith.addf %80, %98 : vector<8x32xf32>
    %c0_40 = arith.constant 0 : index
    %c0_41 = arith.constant 0 : index
    %100 = vector.load %arg9[%c0_40, %c0_41] : memref<1x32xf32, #tpu.memory_space<vmem>>, vector<1x32xf32>
    %101 = vector.broadcast %100 : vector<1x32xf32> to vector<8x32xf32>
    %102 = arith.addf %99, %101 : vector<8x32xf32>
    %103 = vector.shape_cast %102 : vector<8x32xf32> to vector<1x8x32xf32>
    %c0_42 = arith.constant 0 : index
    %c0_43 = arith.constant 0 : index
    %c0_44 = arith.constant 0 : index
    %104 = vector.load %arg10[%c0_42, %c0_43, %c0_44] : memref<1x8x32xf32, #tpu.memory_space<vmem>>, vector<1x8x32xf32>
    tpu.vector_store %arg10[%c0_42, %c0_43, %c0_44], %103 {strides = array<i32>} : memref<1x8x32xf32, #tpu.memory_space<vmem>>, vector<1x8x32xf32>,
    return
  }
  func.func @transform_0(%arg0: i32) -> (i32, i32, i32) {
    %c0_i32 = arith.constant 0 : i32
    %c0_i32_0 = arith.constant 0 : i32
    %c0_i32_1 = arith.constant 0 : i32
    return %arg0, %c0_i32, %c0_i32_0 : i32, i32, i32
  }
  func.func @transform_1(%arg0: i32) -> (i32, i32) {
    %c0_i32 = arith.constant 0 : i32
    %c0_i32_0 = arith.constant 0 : i32
    %c0_i32_1 = arith.constant 0 : i32
    return %c0_i32, %c0_i32_0 : i32, i32
  }
  func.func @transform_2(%arg0: i32) -> (i32, i32) {
    %c0_i32 = arith.constant 0 : i32
    %c0_i32_0 = arith.constant 0 : i32
    %c0_i32_1 = arith.constant 0 : i32
    return %c0_i32, %c0_i32_0 : i32, i32
  }
  func.func @transform_3(%arg0: i32) -> (i32, i32) {
    %c0_i32 = arith.constant 0 : i32
    %c0_i32_0 = arith.constant 0 : i32
    %c0_i32_1 = arith.constant 0 : i32
    return %c0_i32, %c0_i32_0 : i32, i32
  }
  func.func @transform_4(%arg0: i32) -> (i32, i32) {
    %c0_i32 = arith.constant 0 : i32
    %c0_i32_0 = arith.constant 0 : i32
    %c0_i32_1 = arith.constant 0 : i32
    return %c0_i32, %c0_i32_0 : i32, i32
  }
  func.func @transform_5(%arg0: i32) -> (i32, i32) {
    %c0_i32 = arith.constant 0 : i32
    %c0_i32_0 = arith.constant 0 : i32
    %c0_i32_1 = arith.constant 0 : i32
    return %c0_i32, %c0_i32_0 : i32, i32
  }
  func.func @transform_6(%arg0: i32) -> (i32, i32) {
    %c0_i32 = arith.constant 0 : i32
    %c0_i32_0 = arith.constant 0 : i32
    %c0_i32_1 = arith.constant 0 : i32
    return %c0_i32, %c0_i32_0 : i32, i32
  }
  func.func @transform_7(%arg0: i32) -> (i32, i32) {
    %c0_i32 = arith.constant 0 : i32
    %c0_i32_0 = arith.constant 0 : i32
    %c0_i32_1 = arith.constant 0 : i32
    return %c0_i32, %c0_i32_0 : i32, i32
  }
  func.func @transform_8(%arg0: i32) -> (i32, i32) {
    %c0_i32 = arith.constant 0 : i32
    %c0_i32_0 = arith.constant 0 : i32
    %c0_i32_1 = arith.constant 0 : i32
    return %c0_i32, %c0_i32_0 : i32, i32
  }
  func.func @transform_9(%arg0: i32) -> (i32, i32, i32) {
    %c0_i32 = arith.constant 0 : i32
    %c0_i32_0 = arith.constant 0 : i32
    %c0_i32_1 = arith.constant 0 : i32
    return %arg0, %c0_i32, %c0_i32_0 : i32, i32, i32
  }
}

</mosaic_0001>

<llo_original>
// kernel: tpu_custom_call.1
$region0: #{tpu_custom_call.1}
  #allocation0 [shape = 'u32[]', space=smem, size = 0x4, offset = 0x4, fixed_abs, tag = 'smem constant byte address 0x4 - core index']
  #allocation1 [shape = 'u32[144,128]{1,0:T(1,128)}', space=vmem, size = 0x12000, scoped, tag = 'internal scratch']
  %s0 = inlined_call_operand.hbm [shape: f32[2,8,32], index: 0, kind: input, shape index: {}]
  %s1 = inlined_call_operand.hbm [shape: f32[32,32], index: 1, kind: input, shape index: {}]
  %s2 = inlined_call_operand.vmem [shape: f32[1,32], index: 2, kind: input, shape index: {}]
  %s3 = inlined_call_operand.hbm [shape: f32[32,32], index: 3, kind: input, shape index: {}]
  %s4 = inlined_call_operand.vmem [shape: f32[1,32], index: 4, kind: input, shape index: {}]
  %s5 = inlined_call_operand.hbm [shape: f32[32,32], index: 5, kind: input, shape index: {}]
  %s6 = inlined_call_operand.vmem [shape: f32[1,32], index: 6, kind: input, shape index: {}]
  %s7 = inlined_call_operand.hbm [shape: f32[32,32], index: 7, kind: input, shape index: {}]
  %s8 = inlined_call_operand.vmem [shape: f32[1,32], index: 8, kind: input, shape index: {}]
  %s9 = inlined_call_operand.hbm [shape: f32[2,8,32], index: 9, kind: output, shape index: {}]
  %s10 = sld [smem:[#allocation0]]
  $region89: #{tpu_custom_call.1} parent=0
    _
  %s12 = ssub.s32 1, %s10
  %s13 = scalar_select 0, %s12, %s10
  $region1: #{tpu_custom_call.1} parent=0
    #allocation2 [shape = 'u8[8192]{0}', space=vmem, size = 0x2000, scoped, tag = 'input window, operand 0']
    #allocation3 [shape = 's32[2]{0}', space=sflag, size = 0x8, scoped, tag = 'scoped memory for tpu_custom_call.1']
    #allocation4 [shape = 's32[2]{0}', space=sflag, size = 0x8, scoped, tag = 'scoped memory for tpu_custom_call.1']
    #allocation5 [shape = 'u8[16384]{0}', space=vmem, size = 0x4000, scoped, tag = 'input window, operand 1, single buffered']
    #allocation6 [shape = 's32[1]{0}', space=sflag, size = 0x4, scoped, tag = 'scoped memory for tpu_custom_call.1']
    #allocation7 [shape = 'u8[16384]{0}', space=vmem, size = 0x4000, scoped, tag = 'input window, operand 3, single buffered']
    #allocation8 [shape = 'u8[16384]{0}', space=vmem, size = 0x4000, scoped, tag = 'input window, operand 5, single buffered']
    #allocation9 [shape = 's32[1]{0}', space=sflag, size = 0x4, scoped, tag = 'scoped memory for tpu_custom_call.1']
    #allocation10 [shape = 'u8[16384]{0}', space=vmem, size = 0x4000, scoped, tag = 'input window, operand 7, single buffered']
    #allocation11 [shape = 'u8[8192]{0}', space=vmem, size = 0x2000, scoped, tag = 'output window, operand 0']
    %14 = vsyncpa [#allocation3], 0
    %s15 = scalar_lea.sflag [#allocation3], 1
    %16 = vsyncpa %s15, 0
    %17 = vsyncpa [#allocation6], 0
    %18 = vsyncpa [#allocation9], 0
    %19 = vsyncpa [#allocation4], 0
    %s20 = scalar_lea.sflag [#allocation4], 1
    %21 = vsyncpa %s20, 0
    loop: start=0, step=1, limit=4
    $region2: #{tpu_custom_call.1} parent=1 // loop_pre_header
      _
    $region3: #{tpu_custom_call.1} parent=1 // loop_header
      %s23 = sphi 0, %s27
      %p24 = scmp.ge.s32.totalorder %s23, 4
      %s33 = sphi 0, %s35
      %s36 = sphi 0, %s33
      %s37 = sphi 0, %s36
      %s53 = sphi 0, %s37
      %s57 = sphi 0, %s57
      %s59 = sphi 0, %s57
      %s60 = sphi 0, %s59
      %s74 = sphi 0, %s60
      %s78 = sphi 0, %s78
      %s80 = sphi 0, %s78
      %s81 = sphi 0, %s80
      %s95 = sphi 0, %s81
      %s99 = sphi 0, %s99
      %s101 = sphi 0, %s99
      %s102 = sphi 0, %s101
      %s116 = sphi 0, %s102
      %s120 = sphi 0, %s120
      %s122 = sphi 0, %s120
      %s123 = sphi 0, %s122
      %s137 = sphi 0, %s123
      %s141 = sphi 0, %s141
      %s143 = sphi 0, %s141
      %s144 = sphi 0, %s143
      %s158 = sphi 0, %s144
      %s162 = sphi 0, %s162
      %s164 = sphi 0, %s162
      %s165 = sphi 0, %s164
      %s179 = sphi 0, %s165
      %s183 = sphi 0, %s183
      %s185 = sphi 0, %s183
      %s186 = sphi 0, %s185
      %s200 = sphi 0, %s186
      %s204 = sphi 0, %s204
      %s206 = sphi 0, %s204
      %s207 = sphi 0, %s206
      %s221 = sphi 0, %s207
      %s227 = sphi 0, %s229
      %s230 = sphi 0, %s227
      %s231 = sphi 0, %s230
      %s247 = sphi 0, %s231
    $region4: #{tpu_custom_call.1} parent=1 // loop_header_branch
      %26 = sbr.rel (%p24) target = $region8
    $region5: #{tpu_custom_call.1} parent=1 // loop_body
      %s28 = ssub.s32 %s23, 1
      %s29 = ssub.s32 %s23, 2
      %s30 = sadd.s32 %s23, 1
      %s31 = ssub.s32 %s23, %s30
      %p32 = scmp.eq.s32.totalorder %s31, 0
      %s34 = sadd.s32 %s33, 1
      %s35 = scalar_select %p32, %s33, %s34
      %p38 = pneg %p32
      %p39 = scmp.eq.s32.totalorder %s23, 1
      %p40 = por %p38, %p39
      %p41 = scmp.ne.s32.totalorder %s33, %s36
      %p42 = scmp.eq.s32.totalorder %s23, 0
      %p43 = por %p41, %p42
      %p44 = scmp.ne.s32.totalorder %s33, %s36
      %p45 = scmp.eq.s32.totalorder %s28, 1
      %p46 = por %p44, %p45
      %p47 = scmp.ne.s32.totalorder %s36, %s37
      %p48 = scmp.eq.s32.totalorder %s28, 0
      %p49 = por %p47, %p48
      %p50 = scmp.ne.s32.totalorder %s36, %s37
      %p51 = scmp.eq.s32.totalorder %s29, 1
      %p52 = por %p50, %p51
      %p54 = scmp.ne.s32.totalorder %s37, %s53
      %p55 = scmp.eq.s32.totalorder %s29, 0
      %p56 = por %p54, %p55
      %s58 = sadd.s32 %s57, 1
      %p61 = scmp.eq.s32.totalorder %s23, 1
      %p62 = scmp.ne.s32.totalorder %s57, %s59
      %p63 = scmp.eq.s32.totalorder %s23, 0
      %p64 = por %p62, %p63
      %p65 = scmp.ne.s32.totalorder %s57, %s59
      %p66 = scmp.eq.s32.totalorder %s28, 1
      %p67 = por %p65, %p66
      %p68 = scmp.ne.s32.totalorder %s59, %s60
      %p69 = scmp.eq.s32.totalorder %s28, 0
      %p70 = por %p68, %p69
      %p71 = scmp.ne.s32.totalorder %s59, %s60
      %p72 = scmp.eq.s32.totalorder %s29, 1
      %p73 = por %p71, %p72
      %p75 = scmp.ne.s32.totalorder %s60, %s74
      %p76 = scmp.eq.s32.totalorder %s29, 0
      %p77 = por %p75, %p76
      %s79 = sadd.s32 %s78, 1
      %p82 = scmp.eq.s32.totalorder %s23, 1
      %p83 = scmp.ne.s32.totalorder %s78, %s80
      %p84 = scmp.eq.s32.totalorder %s23, 0
      %p85 = por %p83, %p84
      %p86 = scmp.ne.s32.totalorder %s78, %s80
      %p87 = scmp.eq.s32.totalorder %s28, 1
      %p88 = por %p86, %p87
      %p89 = scmp.ne.s32.totalorder %s80, %s81
      %p90 = scmp.eq.s32.totalorder %s28, 0
      %p91 = por %p89, %p90
      %p92 = scmp.ne.s32.totalorder %s80, %s81
      %p93 = scmp.eq.s32.totalorder %s29, 1
      %p94 = por %p92, %p93
      %p96 = scmp.ne.s32.totalorder %s81, %s95
      %p97 = scmp.eq.s32.totalorder %s29, 0
      %p98 = por %p96, %p97
      %s100 = sadd.s32 %s99, 1
      %p103 = scmp.eq.s32.totalorder %s23, 1
      %p104 = scmp.ne.s32.totalorder %s99, %s101
      %p105 = scmp.eq.s32.totalorder %s23, 0
      %p106 = por %p104, %p105
      %p107 = scmp.ne.s32.totalorder %s99, %s101
      %p108 = scmp.eq.s32.totalorder %s28, 1
      %p109 = por %p107, %p108
      %p110 = scmp.ne.s32.totalorder %s101, %s102
      %p111 = scmp.eq.s32.totalorder %s28, 0
      %p112 = por %p110, %p111
      %p113 = scmp.ne.s32.totalorder %s101, %s102
      %p114 = scmp.eq.s32.totalorder %s29, 1
      %p115 = por %p113, %p114
      %p117 = scmp.ne.s32.totalorder %s102, %s116
      %p118 = scmp.eq.s32.totalorder %s29, 0
      %p119 = por %p117, %p118
      %s121 = sadd.s32 %s120, 1
      %p124 = scmp.eq.s32.totalorder %s23, 1
      %p125 = scmp.ne.s32.totalorder %s120, %s122
      %p126 = scmp.eq.s32.totalorder %s23, 0
      %p127 = por %p125, %p126
      %p128 = scmp.ne.s32.totalorder %s120, %s122
      %p129 = scmp.eq.s32.totalorder %s28, 1
      %p130 = por %p128, %p129
      %p131 = scmp.ne.s32.totalorder %s122, %s123
      %p132 = scmp.eq.s32.totalorder %s28, 0
      %p133 = por %p131, %p132
      %p134 = scmp.ne.s32.totalorder %s122, %s123
      %p135 = scmp.eq.s32.totalorder %s29, 1
      %p136 = por %p134, %p135
      %p138 = scmp.ne.s32.totalorder %s123, %s137
      %p139 = scmp.eq.s32.totalorder %s29, 0
      %p140 = por %p138, %p139
      %s142 = sadd.s32 %s141, 1
      %p145 = scmp.eq.s32.totalorder %s23, 1
      %p146 = scmp.ne.s32.totalorder %s141, %s143
      %p147 = scmp.eq.s32.totalorder %s23, 0
      %p148 = por %p146, %p147
      %p149 = scmp.ne.s32.totalorder %s141, %s143
      %p150 = scmp.eq.s32.totalorder %s28, 1
      %p151 = por %p149, %p150
      %p152 = scmp.ne.s32.totalorder %s143, %s144
      %p153 = scmp.eq.s32.totalorder %s28, 0
      %p154 = por %p152, %p153
      %p155 = scmp.ne.s32.totalorder %s143, %s144
      %p156 = scmp.eq.s32.totalorder %s29, 1
      %p157 = por %p155, %p156
      %p159 = scmp.ne.s32.totalorder %s144, %s158
      %p160 = scmp.eq.s32.totalorder %s29, 0
      %p161 = por %p159, %p160
      %s163 = sadd.s32 %s162, 1
      %p166 = scmp.eq.s32.totalorder %s23, 1
      %p167 = scmp.ne.s32.totalorder %s162, %s164
      %p168 = scmp.eq.s32.totalorder %s23, 0
      %p169 = por %p167, %p168
      %p170 = scmp.ne.s32.totalorder %s162, %s164
      %p171 = scmp.eq.s32.totalorder %s28, 1
      %p172 = por %p170, %p171
      %p173 = scmp.ne.s32.totalorder %s164, %s165
      %p174 = scmp.eq.s32.totalorder %s28, 0
      %p175 = por %p173, %p174
      %p176 = scmp.ne.s32.totalorder %s164, %s165
      %p177 = scmp.eq.s32.totalorder %s29, 1
      %p178 = por %p176, %p177
      %p180 = scmp.ne.s32.totalorder %s165, %s179
      %p181 = scmp.eq.s32.totalorder %s29, 0
      %p182 = por %p180, %p181
      %s184 = sadd.s32 %s183, 1
      %p187 = scmp.eq.s32.totalorder %s23, 1
      %p188 = scmp.ne.s32.totalorder %s183, %s185
      %p189 = scmp.eq.s32.totalorder %s23, 0
      %p190 = por %p188, %p189
      %p191 = scmp.ne.s32.totalorder %s183, %s185
      %p192 = scmp.eq.s32.totalorder %s28, 1
      %p193 = por %p191, %p192
      %p194 = scmp.ne.s32.totalorder %s185, %s186
      %p195 = scmp.eq.s32.totalorder %s28, 0
      %p196 = por %p194, %p195
      %p197 = scmp.ne.s32.totalorder %s185, %s186
      %p198 = scmp.eq.s32.totalorder %s29, 1
      %p199 = por %p197, %p198
      %p201 = scmp.ne.s32.totalorder %s186, %s200
      %p202 = scmp.eq.s32.totalorder %s29, 0
      %p203 = por %p201, %p202
      %s205 = sadd.s32 %s204, 1
      %p208 = scmp.eq.s32.totalorder %s23, 1
      %p209 = scmp.ne.s32.totalorder %s204, %s206
      %p210 = scmp.eq.s32.totalorder %s23, 0
      %p211 = por %p209, %p210
      %p212 = scmp.ne.s32.totalorder %s204, %s206
      %p213 = scmp.eq.s32.totalorder %s28, 1
      %p214 = por %p212, %p213
      %p215 = scmp.ne.s32.totalorder %s206, %s207
      %p216 = scmp.eq.s32.totalorder %s28, 0
      %p217 = por %p215, %p216
      %p218 = scmp.ne.s32.totalorder %s206, %s207
      %p219 = scmp.eq.s32.totalorder %s29, 1
      %p220 = por %p218, %p219
      %p222 = scmp.ne.s32.totalorder %s207, %s221
      %p223 = scmp.eq.s32.totalorder %s29, 0
      %p224 = por %p222, %p223
      %s225 = ssub.s32 %s23, %s30
      %p226 = scmp.eq.s32.totalorder %s225, 0
      %s228 = sadd.s32 %s227, 1
      %s229 = scalar_select %p226, %s227, %s228
      %p232 = pneg %p226
      %p233 = scmp.eq.s32.totalorder %s23, 1
      %p234 = por %p232, %p233
      %p235 = scmp.ne.s32.totalorder %s227, %s230
      %p236 = scmp.eq.s32.totalorder %s23, 0
      %p237 = por %p235, %p236
      %p238 = scmp.ne.s32.totalorder %s227, %s230
      %p239 = scmp.eq.s32.totalorder %s28, 1
      %p240 = por %p238, %p239
      %p241 = scmp.ne.s32.totalorder %s230, %s231
      %p242 = scmp.eq.s32.totalorder %s28, 0
      %p243 = por %p241, %p242
      %p244 = scmp.ne.s32.totalorder %s230, %s231
      %p245 = scmp.eq.s32.totalorder %s29, 1
      %p246 = por %p244, %p245
      %p248 = scmp.ne.s32.totalorder %s231, %s247
      %p249 = scmp.eq.s32.totalorder %s29, 0
      %p250 = por %p248, %p249
      %p251 = scmp.le.s32.totalorder 1, %s23
      %p252 = scmp.lt.s32.totalorder %s23, 3
      %p253 = pnand %p251, %p252
      %p254 = pneg %p253
      // Predicated region
      $region9: #{tpu_custom_call.1} parent=5 // pred_check
        _
      $region10: #{tpu_custom_call.1} parent=5 // pred_check_branch
        %256 = sbr.rel (%p253) target = $region12
      $region11: #{tpu_custom_call.1} parent=5 // pred_region
        %s257 = ssub.s32 %s23, 1
        // Predicated region
        $region13: #{tpu_custom_call.1} parent=11 // pred_check
          %p258 = pneg %p70
        $region14: #{tpu_custom_call.1} parent=11 // pred_check_branch
          %260 = sbr.rel (%p258) target = $region16
        $region15: #{tpu_custom_call.1} parent=11 // pred_region
          %s262 = ssub.s32 512, 512
          %263 = vsyncadd [#allocation6], %s262
          %s264 = sshll.u32 [#allocation5], 4
          %s265 = int_to_ptr.vmem [resolvable:$true] %s264
          %270 = dma.hbm_to_vmem [thread:$0]  %s1, 512, %s265, [#allocation6], 128, 128, 8
        $region16: #{tpu_custom_call.1} parent=11 // pred_fallthru
          _
        // Predicated region
        $region17: #{tpu_custom_call.1} parent=11 // pred_check
          %p271 = pneg %p91
        $region18: #{tpu_custom_call.1} parent=11 // pred_check_branch
          %273 = sbr.rel (%p271) target = $region20
        $region19: #{tpu_custom_call.1} parent=11 // pred_region
          _
        $region20: #{tpu_custom_call.1} parent=11 // pred_fallthru
          _
        // Predicated region
        $region21: #{tpu_custom_call.1} parent=11 // pred_check
          %p274 = pneg %p112
        $region22: #{tpu_custom_call.1} parent=11 // pred_check_branch
          %276 = sbr.rel (%p274) target = $region24
        $region23: #{tpu_custom_call.1} parent=11 // pred_region
          %s278 = ssub.s32 512, 512
          %279 = vsyncadd [#allocation6], %s278
          %s280 = sshll.u32 [#allocation7], 4
          %s281 = int_to_ptr.vmem [resolvable:$true] %s280
          %286 = dma.hbm_to_vmem [thread:$0]  %s3, 512, %s281, [#allocation6], 128, 128, 8
        $region24: #{tpu_custom_call.1} parent=11 // pred_fallthru
          _
        // Predicated region
        $region25: #{tpu_custom_call.1} parent=11 // pred_check
          %p287 = pneg %p133
        $region26: #{tpu_custom_call.1} parent=11 // pred_check_branch
          %289 = sbr.rel (%p287) target = $region28
        $region27: #{tpu_custom_call.1} parent=11 // pred_region
          _
        $region28: #{tpu_custom_call.1} parent=11 // pred_fallthru
          _
        // Predicated region
        $region29: #{tpu_custom_call.1} parent=11 // pred_check
          %p290 = pneg %p154
        $region30: #{tpu_custom_call.1} parent=11 // pred_check_branch
          %292 = sbr.rel (%p290) target = $region32
        $region31: #{tpu_custom_call.1} parent=11 // pred_region
          %s294 = ssub.s32 512, 512
          %295 = vsyncadd [#allocation9], %s294
          %s296 = sshll.u32 [#allocation8], 4
          %s297 = int_to_ptr.vmem [resolvable:$true] %s296
          %302 = dma.hbm_to_vmem [thread:$0]  %s5, 512, %s297, [#allocation9], 128, 128, 8
        $region32: #{tpu_custom_call.1} parent=11 // pred_fallthru
          _
        // Predicated region
        $region33: #{tpu_custom_call.1} parent=11 // pred_check
          %p303 = pneg %p175
        $region34: #{tpu_custom_call.1} parent=11 // pred_check_branch
          %305 = sbr.rel (%p303) target = $region36
        $region35: #{tpu_custom_call.1} parent=11 // pred_region
          _
        $region36: #{tpu_custom_call.1} parent=11 // pred_fallthru
          _
        // Predicated region
        $region37: #{tpu_custom_call.1} parent=11 // pred_check
          %p306 = pneg %p196
        $region38: #{tpu_custom_call.1} parent=11 // pred_check_branch
          %308 = sbr.rel (%p306) target = $region40
        $region39: #{tpu_custom_call.1} parent=11 // pred_region
          %s310 = ssub.s32 512, 512
          %311 = vsyncadd [#allocation9], %s310
          %s312 = sshll.u32 [#allocation10], 4
          %s313 = int_to_ptr.vmem [resolvable:$true] %s312
          %318 = dma.hbm_to_vmem [thread:$0]  %s7, 512, %s313, [#allocation9], 128, 128, 8
        $region40: #{tpu_custom_call.1} parent=11 // pred_fallthru
          _
        // Predicated region
        $region41: #{tpu_custom_call.1} parent=11 // pred_check
          %p319 = pneg %p217
        $region42: #{tpu_custom_call.1} parent=11 // pred_check_branch
          %321 = sbr.rel (%p319) target = $region44
        $region43: #{tpu_custom_call.1} parent=11 // pred_region
          _
        $region44: #{tpu_custom_call.1} parent=11 // pred_fallthru
          _
      $region12: #{tpu_custom_call.1} parent=5 // pred_fallthru
        _
      %p322 = scmp.lt.s32.totalorder %s23, 2
      // Predicated region
      $region45: #{tpu_custom_call.1} parent=5 // pred_check
        %p323 = pneg %p322
      $region46: #{tpu_custom_call.1} parent=5 // pred_check_branch
        %325 = sbr.rel (%p323) target = $region48
      $region47: #{tpu_custom_call.1} parent=5 // pred_region
        // Predicated region
        $region49: #{tpu_custom_call.1} parent=47 // pred_check
          %p326 = pneg %p43
        $region50: #{tpu_custom_call.1} parent=47 // pred_check_branch
          %328 = sbr.rel (%p326) target = $region52
        $region51: #{tpu_custom_call.1} parent=47 // pred_region
          %s329 = sand.u32 %s33, 1
          %s330 = scalar_lea.sflag [#allocation3], %s329
          %s331 = sand.u32 %s33, 1
          %s332 = smul.addr %s331, 8
          %s333 = scalar_lea.vmem [#allocation2], %s332
          %s335 = ssub.s32 128, 128
          %336 = vsyncadd %s330, %s335
          %s337 = smul.addr %s23, 128
          %s338 = scalar_lea.hbm %s0, %s337
          %s340 = sshll.u32 %s333, 4
          %s341 = int_to_ptr.vmem [resolvable:$true] %s340
          %343 = dma.hbm_to_vmem [thread:$0]  %s338, 128, %s341, %s330
        $region52: #{tpu_custom_call.1} parent=47 // pred_fallthru
          _
      $region48: #{tpu_custom_call.1} parent=5 // pred_fallthru
        _
      %p344 = scmp.le.s32.totalorder 1, %s23
      %p345 = scmp.lt.s32.totalorder %s23, 3
      %p346 = pnand %p344, %p345
      %p347 = pneg %p346
      // Predicated region
      $region53: #{tpu_custom_call.1} parent=5 // pred_check
        _
      $region54: #{tpu_custom_call.1} parent=5 // pred_check_branch
        %349 = sbr.rel (%p346) target = $region56
      $region55: #{tpu_custom_call.1} parent=5 // pred_region
        %s350 = ssub.s32 %s23, 1
        %s351 = sand.u32 %s36, 1
        %s352 = scalar_lea.sflag [#allocation3], %s351
        %s353 = sand.u32 %s36, 1
        %s354 = smul.addr %s353, 8
        %s355 = scalar_lea.vmem [#allocation2], %s354
        // Predicated region
        $region57: #{tpu_custom_call.1} parent=55 // pred_check
          %p356 = pneg %p49
        $region58: #{tpu_custom_call.1} parent=55 // pred_check_branch
          %358 = sbr.rel (%p356) target = $region60
        $region59: #{tpu_custom_call.1} parent=55 // pred_region
          %359 = dma.done %s352, 128
        $region60: #{tpu_custom_call.1} parent=55 // pred_fallthru
          _
        // Predicated region
        $region61: #{tpu_custom_call.1} parent=55 // pred_check
          %p360 = pneg %p70
        $region62: #{tpu_custom_call.1} parent=55 // pred_check_branch
          %362 = sbr.rel (%p360) target = $region64
        $region63: #{tpu_custom_call.1} parent=55 // pred_region
          %363 = dma.done [#allocation6], 512
        $region64: #{tpu_custom_call.1} parent=55 // pred_fallthru
          _
        // Predicated region
        $region65: #{tpu_custom_call.1} parent=55 // pred_check
          %p364 = pneg %p112
        $region66: #{tpu_custom_call.1} parent=55 // pred_check_branch
          %366 = sbr.rel (%p364) target = $region68
        $region67: #{tpu_custom_call.1} parent=55 // pred_region
          %367 = dma.done [#allocation6], 512
        $region68: #{tpu_custom_call.1} parent=55 // pred_fallthru
          _
        // Predicated region
        $region69: #{tpu_custom_call.1} parent=55 // pred_check
          %p368 = pneg %p154
        $region70: #{tpu_custom_call.1} parent=55 // pred_check_branch
          %370 = sbr.rel (%p368) target = $region72
        $region71: #{tpu_custom_call.1} parent=55 // pred_region
          %371 = dma.done [#allocation9], 512
        $region72: #{tpu_custom_call.1} parent=55 // pred_fallthru
          _
        // Predicated region
        $region73: #{tpu_custom_call.1} parent=55 // pred_check
          %p372 = pneg %p196
        $region74: #{tpu_custom_call.1} parent=55 // pred_check_branch
          %374 = sbr.rel (%p372) target = $region76
        $region75: #{tpu_custom_call.1} parent=55 // pred_region
          %375 = dma.done [#allocation9], 512
        $region76: #{tpu_custom_call.1} parent=55 // pred_fallthru
          _
        %s376 = sand.u32 %s36, 1
        %s377 = scalar_lea.sflag [#allocation3], %s376
        %s378 = sand.u32 %s36, 1
        %s379 = smul.addr %s378, 8
        %s380 = scalar_lea.vmem [#allocation2], %s379
        %p381 = pneg %p49
        %p382 = pneg %p46
        %p383 = pneg %p70
        %p384 = pneg %p67
        %p385 = pneg %p91
        %p386 = pneg %p88
        %p387 = pneg %p112
        %p388 = pneg %p109
        %p389 = pneg %p133
        %p390 = pneg %p130
        %p391 = pneg %p154
        %p392 = pneg %p151
        %p393 = pneg %p175
        %p394 = pneg %p172
        %p395 = pneg %p196
        %p396 = pneg %p193
        %p397 = pneg %p217
        %p398 = pneg %p214
        %p399 = pneg %p243
        %p400 = pneg %p240
        %s401 = sand.u32 %s230, 1
        %s402 = scalar_lea.sflag [#allocation4], %s401
        %s403 = sand.u32 %s230, 1
        %s404 = smul.addr %s403, 8
        %s405 = scalar_lea.vmem [#allocation11], %s404
        %v406 = vld [vmem:[%s355] sm:$0xff]
        %v407 = vld [vmem:[#allocation5] sm:$0xff]
        %v408 = vld [vmem:[#allocation5 + $0x8] sm:$0xff]
        %v409 = vld [vmem:[#allocation5 + $0x10] sm:$0xff]
        %v410 = vld [vmem:[#allocation5 + $0x18] sm:$0xff]
        %v411 = vld [vmem:[%s2] sm:$0x1]
        %v413 = vlaneseq
        %v414 = vshrl.u32 %v413, 7
        %v415 = vsub.s32 0, %v414
        %v416 = vrot.slane %v411, %v415
        %vm418 = vcmask 261120
        %v420 = vsel %vm418, %v406, 0
        %v423 = vsel %vm418, %v407, 0
        %v426 = vsel %vm418, %v408, 0
        %v429 = vsel %vm418, %v409, 0
        %v432 = vsel %vm418, %v410, 0
        %434 = vmatprep.subr.mxu0 0.0
        %435 = vmatpush1.xpose.msra.mxu0 %v423
        %436 = vmatprep.subr.mxu0 0.0
        %437 = vmatpush1.xpose.msra.mxu0 %v426
        %438 = vmatprep.subr.mxu0 0.0
        %439 = vmatpush1.xpose.msra.mxu0 %v429
        %440 = vmatprep.subr.mxu0 0.0
        %441 = vmatpush1.xpose.msra.mxu0 %v432
        %442 = vmatprep.subr.mxu0 0.0
        %443 = vmatpush1.xpose.msra.mxu0 0.0
        %444 = vmatprep.subr.mxu0 0.0
        %445 = vmatpush1.xpose.msra.mxu0 0.0
        %446 = vmatprep.subr.mxu0 0.0
        %447 = vmatpush1.xpose.msra.mxu0 0.0
        %448 = vmatprep.subr.mxu0 0.0
        %449 = vmatpush1.xpose.msra.mxu0 0.0
        %450 = vmatprep.subr.mxu0 0.0
        %451 = vmatpush1.xpose.msra.mxu0 0.0
        %452 = vmatprep.subr.mxu0 0.0
        %453 = vmatpush1.xpose.msra.mxu0 0.0
        %454 = vmatprep.subr.mxu0 0.0
        %455 = vmatpush1.xpose.msra.mxu0 0.0
        %456 = vmatprep.subr.mxu0 0.0
        %457 = vmatpush1.xpose.msra.mxu0 0.0
        %458 = vmatprep.subr.mxu0 0.0
        %459 = vmatpush1.xpose.msra.mxu0 0.0
        %460 = vmatprep.subr.mxu0 0.0
        %461 = vmatpush1.xpose.msra.mxu0 0.0
        %462 = vmatprep.subr.mxu0 0.0
        %463 = vmatpush1.xpose.msra.mxu0 0.0
        %464 = vmatprep.subr.mxu0 0.0
        %465 = vmatpush1.xpose.msra.mxu0 0.0
        %466 = vmatprep.subr.mxu0 0.0
        %467 = vmatpush1.xpose.msra.mxu0 0.0
        %468 = vmatprep.subr.mxu0 0.0
        %469 = vmatpush1.xpose.msra.mxu0 0.0
        %470 = vmatprep.subr.mxu0 0.0
        %471 = vmatpush1.xpose.msra.mxu0 0.0
        %472 = vmatprep.subr.mxu0 0.0
        %473 = vmatpush1.xpose.msra.mxu0 0.0
        %474 = vmatprep.subr.mxu0 0.0
        %475 = vmatpush1.xpose.msra.mxu0 0.0
        %476 = vmatprep.subr.mxu0 0.0
        %477 = vmatpush1.xpose.msra.mxu0 0.0
        %478 = vmatprep.subr.mxu0 0.0
        %479 = vmatpush1.xpose.msra.mxu0 0.0
        %480 = vmatprep.subr.mxu0 0.0
        %481 = vmatpush1.xpose.msra.mxu0 0.0
        %482 = vmatprep.subr.mxu0 0.0
        %483 = vmatpush1.xpose.msra.mxu0 0.0
        %484 = vmatprep.subr.mxu0 0.0
        %485 = vmatpush1.xpose.msra.mxu0 0.0
        %486 = vmatprep.subr.mxu0 0.0
        %487 = vmatpush1.xpose.msra.mxu0 0.0
        %488 = vmatprep.subr.mxu0 0.0
        %489 = vmatpush1.xpose.msra.mxu0 0.0
        %490 = vmatprep.subr.mxu0 0.0
        %491 = vmatpush1.xpose.msra.mxu0 0.0
        %492 = vmatprep.subr.mxu0 0.0
        %493 = vmatpush1.xpose.msra.mxu0 0.0
        %494 = vmatprep.subr.mxu0 0.0
        %495 = vmatpush1.xpose.msra.mxu0 0.0
        %496 = vmatprep.subr.mxu0 0.0
        %497 = vmatpush1.xpose.msra.mxu0 0.0
        %498 = vmatprep.mubr.f32.mxu0 0.0
        %499 = vmatmul.mubr.f32.gmra.mrb[0].mxu0 %v420
        %v500 = vpop.f32.mrb[0].mxu0
        %v501 = vadd.f32 %v416, %v500
        %v502 = vpop.f32.mrb[0].mxu0
        %503 = vdwg.mxu0
        %v504 = vld [vmem:[#allocation7] sm:$0xff]
        %v505 = vld [vmem:[#allocation7 + $0x8] sm:$0xff]
        %v506 = vld [vmem:[#allocation7 + $0x10] sm:$0xff]
        %v507 = vld [vmem:[#allocation7 + $0x18] sm:$0xff]
        %v508 = vld [vmem:[%s4] sm:$0x1]
        %v510 = vlaneseq
        %v511 = vshrl.u32 %v510, 7
        %v512 = vsub.s32 0, %v511
        %v513 = vrot.slane %v508, %v512
        %v516 = vsel %vm418, %v504, 0
        %v519 = vsel %vm418, %v505, 0
        %v522 = vsel %vm418, %v506, 0
        %v525 = vsel %vm418, %v507, 0
        %527 = vmatprep.subr.mxu0 0.0
        %528 = vmatpush1.xpose.msra.mxu0 %v516
        %529 = vmatprep.subr.mxu0 0.0
        %530 = vmatpush1.xpose.msra.mxu0 %v519
        %531 = vmatprep.subr.mxu0 0.0
        %532 = vmatpush1.xpose.msra.mxu0 %v522
        %533 = vmatprep.subr.mxu0 0.0
        %534 = vmatpush1.xpose.msra.mxu0 %v525
        %535 = vmatprep.subr.mxu0 0.0
        %536 = vmatpush1.xpose.msra.mxu0 0.0
        %537 = vmatprep.subr.mxu0 0.0
        %538 = vmatpush1.xpose.msra.mxu0 0.0
        %539 = vmatprep.subr.mxu0 0.0
        %540 = vmatpush1.xpose.msra.mxu0 0.0
        %541 = vmatprep.subr.mxu0 0.0
        %542 = vmatpush1.xpose.msra.mxu0 0.0
        %543 = vmatprep.subr.mxu0 0.0
        %544 = vmatpush1.xpose.msra.mxu0 0.0
        %545 = vmatprep.subr.mxu0 0.0
        %546 = vmatpush1.xpose.msra.mxu0 0.0
        %547 = vmatprep.subr.mxu0 0.0
        %548 = vmatpush1.xpose.msra.mxu0 0.0
        %549 = vmatprep.subr.mxu0 0.0
        %550 = vmatpush1.xpose.msra.mxu0 0.0
        %551 = vmatprep.subr.mxu0 0.0
        %552 = vmatpush1.xpose.msra.mxu0 0.0
        %553 = vmatprep.subr.mxu0 0.0
        %554 = vmatpush1.xpose.msra.mxu0 0.0
        %555 = vmatprep.subr.mxu0 0.0
        %556 = vmatpush1.xpose.msra.mxu0 0.0
        %557 = vmatprep.subr.mxu0 0.0
        %558 = vmatpush1.xpose.msra.mxu0 0.0
        %559 = vmatprep.subr.mxu0 0.0
        %560 = vmatpush1.xpose.msra.mxu0 0.0
        %561 = vmatprep.subr.mxu0 0.0
        %562 = vmatpush1.xpose.msra.mxu0 0.0
        %563 = vmatprep.subr.mxu0 0.0
        %564 = vmatpush1.xpose.msra.mxu0 0.0
        %565 = vmatprep.subr.mxu0 0.0
        %566 = vmatpush1.xpose.msra.mxu0 0.0
        %567 = vmatprep.subr.mxu0 0.0
        %568 = vmatpush1.xpose.msra.mxu0 0.0
        %569 = vmatprep.subr.mxu0 0.0
        %570 = vmatpush1.xpose.msra.mxu0 0.0
        %571 = vmatprep.subr.mxu0 0.0
        %572 = vmatpush1.xpose.msra.mxu0 0.0
        %573 = vmatprep.subr.mxu0 0.0
        %574 = vmatpush1.xpose.msra.mxu0 0.0
        %575 = vmatprep.subr.mxu0 0.0
        %576 = vmatpush1.xpose.msra.mxu0 0.0
        %577 = vmatprep.subr.mxu0 0.0
        %578 = vmatpush1.xpose.msra.mxu0 0.0
        %579 = vmatprep.subr.mxu0 0.0
        %580 = vmatpush1.xpose.msra.mxu0 0.0
        %581 = vmatprep.subr.mxu0 0.0
        %582 = vmatpush1.xpose.msra.mxu0 0.0
        %583 = vmatprep.subr.mxu0 0.0
        %584 = vmatpush1.xpose.msra.mxu0 0.0
        %585 = vmatprep.subr.mxu0 0.0
        %586 = vmatpush1.xpose.msra.mxu0 0.0
        %587 = vmatprep.subr.mxu0 0.0
        %588 = vmatpush1.xpose.msra.mxu0 0.0
        %589 = vmatprep.subr.mxu0 0.0
        %590 = vmatpush1.xpose.msra.mxu0 0.0
        %591 = vmatprep.mubr.f32.mxu0 0.0
        %592 = vmatmul.mubr.f32.gmra.mrb[0].mxu0 %v420
        %v593 = vpop.f32.mrb[0].mxu0
        %v594 = vadd.f32 %v513, %v593
        %v595 = vpop.f32.mrb[0].mxu0
        %596 = vdwg.mxu0
        %v597 = vld [vmem:[#allocation8] sm:$0xff]
        %v598 = vld [vmem:[#allocation8 + $0x8] sm:$0xff]
        %v599 = vld [vmem:[#allocation8 + $0x10] sm:$0xff]
        %v600 = vld [vmem:[#allocation8 + $0x18] sm:$0xff]
        %v601 = vld [vmem:[%s6] sm:$0x1]
        %v603 = vlaneseq
        %v604 = vshrl.u32 %v603, 7
        %v605 = vsub.s32 0, %v604
        %v606 = vrot.slane %v601, %v605
        %v609 = vsel %vm418, %v597, 0
        %v612 = vsel %vm418, %v598, 0
        %v615 = vsel %vm418, %v599, 0
        %v618 = vsel %vm418, %v600, 0
        %620 = vmatprep.subr.mxu0 0.0
        %621 = vmatpush1.xpose.msra.mxu0 %v609
        %622 = vmatprep.subr.mxu0 0.0
        %623 = vmatpush1.xpose.msra.mxu0 %v612
        %624 = vmatprep.subr.mxu0 0.0
        %625 = vmatpush1.xpose.msra.mxu0 %v615
        %626 = vmatprep.subr.mxu0 0.0
        %627 = vmatpush1.xpose.msra.mxu0 %v618
        %628 = vmatprep.subr.mxu0 0.0
        %629 = vmatpush1.xpose.msra.mxu0 0.0
        %630 = vmatprep.subr.mxu0 0.0
        %631 = vmatpush1.xpose.msra.mxu0 0.0
        %632 = vmatprep.subr.mxu0 0.0
        %633 = vmatpush1.xpose.msra.mxu0 0.0
        %634 = vmatprep.subr.mxu0 0.0
        %635 = vmatpush1.xpose.msra.mxu0 0.0
        %636 = vmatprep.subr.mxu0 0.0
        %637 = vmatpush1.xpose.msra.mxu0 0.0
        %638 = vmatprep.subr.mxu0 0.0
        %639 = vmatpush1.xpose.msra.mxu0 0.0
        %640 = vmatprep.subr.mxu0 0.0
        %641 = vmatpush1.xpose.msra.mxu0 0.0
        %642 = vmatprep.subr.mxu0 0.0
        %643 = vmatpush1.xpose.msra.mxu0 0.0
        %644 = vmatprep.subr.mxu0 0.0
        %645 = vmatpush1.xpose.msra.mxu0 0.0
        %646 = vmatprep.subr.mxu0 0.0
        %647 = vmatpush1.xpose.msra.mxu0 0.0
        %648 = vmatprep.subr.mxu0 0.0
        %649 = vmatpush1.xpose.msra.mxu0 0.0
        %650 = vmatprep.subr.mxu0 0.0
        %651 = vmatpush1.xpose.msra.mxu0 0.0
        %652 = vmatprep.subr.mxu0 0.0
        %653 = vmatpush1.xpose.msra.mxu0 0.0
        %654 = vmatprep.subr.mxu0 0.0
        %655 = vmatpush1.xpose.msra.mxu0 0.0
        %656 = vmatprep.subr.mxu0 0.0
        %657 = vmatpush1.xpose.msra.mxu0 0.0
        %658 = vmatprep.subr.mxu0 0.0
        %659 = vmatpush1.xpose.msra.mxu0 0.0
        %660 = vmatprep.subr.mxu0 0.0
        %661 = vmatpush1.xpose.msra.mxu0 0.0
        %662 = vmatprep.subr.mxu0 0.0
        %663 = vmatpush1.xpose.msra.mxu0 0.0
        %664 = vmatprep.subr.mxu0 0.0
        %665 = vmatpush1.xpose.msra.mxu0 0.0
        %666 = vmatprep.subr.mxu0 0.0
        %667 = vmatpush1.xpose.msra.mxu0 0.0
        %668 = vmatprep.subr.mxu0 0.0
        %669 = vmatpush1.xpose.msra.mxu0 0.0
        %670 = vmatprep.subr.mxu0 0.0
        %671 = vmatpush1.xpose.msra.mxu0 0.0
        %672 = vmatprep.subr.mxu0 0.0
        %673 = vmatpush1.xpose.msra.mxu0 0.0
        %674 = vmatprep.subr.mxu0 0.0
        %675 = vmatpush1.xpose.msra.mxu0 0.0
        %676 = vmatprep.subr.mxu0 0.0
        %677 = vmatpush1.xpose.msra.mxu0 0.0
        %678 = vmatprep.subr.mxu0 0.0
        %679 = vmatpush1.xpose.msra.mxu0 0.0
        %680 = vmatprep.subr.mxu0 0.0
        %681 = vmatpush1.xpose.msra.mxu0 0.0
        %682 = vmatprep.subr.mxu0 0.0
        %683 = vmatpush1.xpose.msra.mxu0 0.0
        %684 = vmatprep.mubr.f32.mxu0 0.0
        %685 = vmatmul.mubr.f32.gmra.mrb[0].mxu0 %v420
        %v686 = vpop.f32.mrb[0].mxu0
        %v687 = vadd.f32 %v606, %v686
        %v688 = vpop.f32.mrb[0].mxu0
        %689 = vdwg.mxu0
        %v690 = vmul.f32 %v501, 0.35355338
        %v691 = vld [vmem:[#allocation10] sm:$0xff]
        %v692 = vld [vmem:[#allocation10 + $0x8] sm:$0xff]
        %v693 = vld [vmem:[#allocation10 + $0x10] sm:$0xff]
        %v694 = vld [vmem:[#allocation10 + $0x18] sm:$0xff]
        %vm695 = vcmask 64512
        %v697 = vsel %vm695, %v690, 0
        %v700 = vsel %vm695, %v594, 0
        %702 = vmatprep.subr.mxu0 0.0
        %703 = vmatpush1.xpose.msra.mxu0 %v700
        %704 = vmatprep.subr.mxu0 0.0
        %705 = vmatpush1.xpose.msra.mxu0 0.0
        %706 = vmatprep.subr.mxu0 0.0
        %707 = vmatpush1.xpose.msra.mxu0 0.0
        %708 = vmatprep.subr.mxu0 0.0
        %709 = vmatpush1.xpose.msra.mxu0 0.0
        %710 = vmatprep.subr.mxu0 0.0
        %711 = vmatpush1.xpose.msra.mxu0 0.0
        %712 = vmatprep.subr.mxu0 0.0
        %713 = vmatpush1.xpose.msra.mxu0 0.0
        %714 = vmatprep.subr.mxu0 0.0
        %715 = vmatpush1.xpose.msra.mxu0 0.0
        %716 = vmatprep.subr.mxu0 0.0
        %717 = vmatpush1.xpose.msra.mxu0 0.0
        %718 = vmatprep.subr.mxu0 0.0
        %719 = vmatpush1.xpose.msra.mxu0 0.0
        %720 = vmatprep.subr.mxu0 0.0
        %721 = vmatpush1.xpose.msra.mxu0 0.0
        %722 = vmatprep.subr.mxu0 0.0
        %723 = vmatpush1.xpose.msra.mxu0 0.0
        %724 = vmatprep.subr.mxu0 0.0
        %725 = vmatpush1.xpose.msra.mxu0 0.0
        %726 = vmatprep.subr.mxu0 0.0
        %727 = vmatpush1.xpose.msra.mxu0 0.0
        %728 = vmatprep.subr.mxu0 0.0
        %729 = vmatpush1.xpose.msra.mxu0 0.0
        %730 = vmatprep.subr.mxu0 0.0
        %731 = vmatpush1.xpose.msra.mxu0 0.0
        %732 = vmatprep.subr.mxu0 0.0
        %733 = vmatpush1.xpose.msra.mxu0 0.0
        %734 = vmatprep.subr.mxu0 0.0
        %735 = vmatpush1.xpose.msra.mxu0 0.0
        %736 = vmatprep.subr.mxu0 0.0
        %737 = vmatpush1.xpose.msra.mxu0 0.0
        %738 = vmatprep.subr.mxu0 0.0
        %739 = vmatpush1.xpose.msra.mxu0 0.0
        %740 = vmatprep.subr.mxu0 0.0
        %741 = vmatpush1.xpose.msra.mxu0 0.0
        %742 = vmatprep.subr.mxu0 0.0
        %743 = vmatpush1.xpose.msra.mxu0 0.0
        %744 = vmatprep.subr.mxu0 0.0
        %745 = vmatpush1.xpose.msra.mxu0 0.0
        %746 = vmatprep.subr.mxu0 0.0
        %747 = vmatpush1.xpose.msra.mxu0 0.0
        %748 = vmatprep.subr.mxu0 0.0
        %749 = vmatpush1.xpose.msra.mxu0 0.0
        %750 = vmatprep.subr.mxu0 0.0
        %751 = vmatpush1.xpose.msra.mxu0 0.0
        %752 = vmatprep.subr.mxu0 0.0
        %753 = vmatpush1.xpose.msra.mxu0 0.0
        %754 = vmatprep.subr.mxu0 0.0
        %755 = vmatpush1.xpose.msra.mxu0 0.0
        %756 = vmatprep.subr.mxu0 0.0
        %757 = vmatpush1.xpose.msra.mxu0 0.0
        %758 = vmatprep.subr.mxu0 0.0
        %759 = vmatpush1.xpose.msra.mxu0 0.0
        %760 = vmatprep.subr.mxu0 0.0
        %761 = vmatpush1.xpose.msra.mxu0 0.0
        %762 = vmatprep.subr.mxu0 0.0
        %763 = vmatpush1.xpose.msra.mxu0 0.0
        %764 = vmatprep.subr.mxu0 0.0
        %765 = vmatpush1.xpose.msra.mxu0 0.0
        %766 = vmatprep.mubr.f32.mxu0 0.0
        %767 = vmatmul.mubr.f32.gmra.mrb[0].mxu0 %v697
        %v768 = vpop.f32.mrb[0].mxu0
        %v769 = vadd.f32 0.0, %v768
        %v770 = vpop.f32.mrb[0].mxu0
        %771 = vdwg.mxu0
        %v772 = vsel %vm695, %v769, -inf
        %773 = vmax.xlane.f32.xlu0 %v772
        %v774 = vpop.xlane.xlu0 %773
        %v775 = vsub.f32 %v769, %v774
        %v776 = vmul.f32 %v775, 1.442695
        %v777 = vpow.pop %v776
        %v778 = vsel %vm695, %v777, 0.0
        %779 = vadd.xlane.f32.xlu0 %v778
        %v780 = vpop.xlane.xlu0 %779
        %v781 = vrcp.pop %v780
        %v782 = vmul.f32 %v777, %v781
        %v784 = vsel %vm695, %v782, 0
        %786 = vmatprep.subr.mxu0 0.0
        %787 = vmatpush1.msra.mxu0 %v687
        %788 = vmatprep.subr.mxu0 0.0
        %789 = vmatpush1.msra.mxu0 0.0
        %790 = vmatprep.subr.mxu0 0.0
        %791 = vmatpush1.msra.mxu0 0.0
        %792 = vmatprep.subr.mxu0 0.0
        %793 = vmatpush1.msra.mxu0 0.0
        %794 = vmatprep.subr.mxu0 0.0
        %795 = vmatpush1.msra.mxu0 0.0
        %796 = vmatprep.subr.mxu0 0.0
        %797 = vmatpush1.msra.mxu0 0.0
        %798 = vmatprep.subr.mxu0 0.0
        %799 = vmatpush1.msra.mxu0 0.0
        %800 = vmatprep.subr.mxu0 0.0
        %801 = vmatpush1.msra.mxu0 0.0
        %802 = vmatprep.subr.mxu0 0.0
        %803 = vmatpush1.msra.mxu0 0.0
        %804 = vmatprep.subr.mxu0 0.0
        %805 = vmatpush1.msra.mxu0 0.0
        %806 = vmatprep.subr.mxu0 0.0
        %807 = vmatpush1.msra.mxu0 0.0
        %808 = vmatprep.subr.mxu0 0.0
        %809 = vmatpush1.msra.mxu0 0.0
        %810 = vmatprep.subr.mxu0 0.0
        %811 = vmatpush1.msra.mxu0 0.0
        %812 = vmatprep.subr.mxu0 0.0
        %813 = vmatpush1.msra.mxu0 0.0
        %814 = vmatprep.subr.mxu0 0.0
        %815 = vmatpush1.msra.mxu0 0.0
        %816 = vmatprep.subr.mxu0 0.0
        %817 = vmatpush1.msra.mxu0 0.0
        %818 = vmatprep.subr.mxu0 0.0
        %819 = vmatpush1.msra.mxu0 0.0
        %820 = vmatprep.subr.mxu0 0.0
        %821 = vmatpush1.msra.mxu0 0.0
        %822 = vmatprep.subr.mxu0 0.0
        %823 = vmatpush1.msra.mxu0 0.0
        %824 = vmatprep.subr.mxu0 0.0
        %825 = vmatpush1.msra.mxu0 0.0
        %826 = vmatprep.subr.mxu0 0.0
        %827 = vmatpush1.msra.mxu0 0.0
        %828 = vmatprep.subr.mxu0 0.0
        %829 = vmatpush1.msra.mxu0 0.0
        %830 = vmatprep.subr.mxu0 0.0
        %831 = vmatpush1.msra.mxu0 0.0
        %832 = vmatprep.subr.mxu0 0.0
        %833 = vmatpush1.msra.mxu0 0.0
        %834 = vmatprep.subr.mxu0 0.0
        %835 = vmatpush1.msra.mxu0 0.0
        %836 = vmatprep.subr.mxu0 0.0
        %837 = vmatpush1.msra.mxu0 0.0
        %838 = vmatprep.subr.mxu0 0.0
        %839 = vmatpush1.msra.mxu0 0.0
        %840 = vmatprep.subr.mxu0 0.0
        %841 = vmatpush1.msra.mxu0 0.0
        %842 = vmatprep.subr.mxu0 0.0
        %843 = vmatpush1.msra.mxu0 0.0
        %844 = vmatprep.subr.mxu0 0.0
        %845 = vmatpush1.msra.mxu0 0.0
        %846 = vmatprep.subr.mxu0 0.0
        %847 = vmatpush1.msra.mxu0 0.0
        %848 = vmatprep.subr.mxu0 0.0
        %849 = vmatpush1.msra.mxu0 0.0
        %850 = vmatprep.mubr.f32.mxu0 0.0
        %851 = vmatmul.mubr.f32.gmra.mrb[0].mxu0 %v784
        %v852 = vpop.f32.mrb[0].mxu0
        %v853 = vadd.f32 0.0, %v852
        %v854 = vpop.f32.mrb[0].mxu0
        %855 = vdwg.mxu0
        %856 = vrot.lane.b32.xlu0 %v690, 120
        %v857 = vpop.permute.xlu0 %856
        %858 = vrot.lane.b32.xlu0 %v594, 120
        %v859 = vpop.permute.xlu0 %858
        %v860 = vsel %vm695, %v857, 0
        %v862 = vsel %vm695, %v859, 0
        %864 = vmatprep.subr.mxu0 0.0
        %865 = vmatpush1.xpose.msra.mxu0 %v862
        %866 = vmatprep.subr.mxu0 0.0
        %867 = vmatpush1.xpose.msra.mxu0 0.0
        %868 = vmatprep.subr.mxu0 0.0
        %869 = vmatpush1.xpose.msra.mxu0 0.0
        %870 = vmatprep.subr.mxu0 0.0
        %871 = vmatpush1.xpose.msra.mxu0 0.0
        %872 = vmatprep.subr.mxu0 0.0
        %873 = vmatpush1.xpose.msra.mxu0 0.0
        %874 = vmatprep.subr.mxu0 0.0
        %875 = vmatpush1.xpose.msra.mxu0 0.0
        %876 = vmatprep.subr.mxu0 0.0
        %877 = vmatpush1.xpose.msra.mxu0 0.0
        %878 = vmatprep.subr.mxu0 0.0
        %879 = vmatpush1.xpose.msra.mxu0 0.0
        %880 = vmatprep.subr.mxu0 0.0
        %881 = vmatpush1.xpose.msra.mxu0 0.0
        %882 = vmatprep.subr.mxu0 0.0
        %883 = vmatpush1.xpose.msra.mxu0 0.0
        %884 = vmatprep.subr.mxu0 0.0
        %885 = vmatpush1.xpose.msra.mxu0 0.0
        %886 = vmatprep.subr.mxu0 0.0
        %887 = vmatpush1.xpose.msra.mxu0 0.0
        %888 = vmatprep.subr.mxu0 0.0
        %889 = vmatpush1.xpose.msra.mxu0 0.0
        %890 = vmatprep.subr.mxu0 0.0
        %891 = vmatpush1.xpose.msra.mxu0 0.0
        %892 = vmatprep.subr.mxu0 0.0
        %893 = vmatpush1.xpose.msra.mxu0 0.0
        %894 = vmatprep.subr.mxu0 0.0
        %895 = vmatpush1.xpose.msra.mxu0 0.0
        %896 = vmatprep.subr.mxu0 0.0
        %897 = vmatpush1.xpose.msra.mxu0 0.0
        %898 = vmatprep.subr.mxu0 0.0
        %899 = vmatpush1.xpose.msra.mxu0 0.0
        %900 = vmatprep.subr.mxu0 0.0
        %901 = vmatpush1.xpose.msra.mxu0 0.0
        %902 = vmatprep.subr.mxu0 0.0
        %903 = vmatpush1.xpose.msra.mxu0 0.0
        %904 = vmatprep.subr.mxu0 0.0
        %905 = vmatpush1.xpose.msra.mxu0 0.0
        %906 = vmatprep.subr.mxu0 0.0
        %907 = vmatpush1.xpose.msra.mxu0 0.0
        %908 = vmatprep.subr.mxu0 0.0
        %909 = vmatpush1.xpose.msra.mxu0 0.0
        %910 = vmatprep.subr.mxu0 0.0
        %911 = vmatpush1.xpose.msra.mxu0 0.0
        %912 = vmatprep.subr.mxu0 0.0
        %913 = vmatpush1.xpose.msra.mxu0 0.0
        %914 = vmatprep.subr.mxu0 0.0
        %915 = vmatpush1.xpose.msra.mxu0 0.0
        %916 = vmatprep.subr.mxu0 0.0
        %917 = vmatpush1.xpose.msra.mxu0 0.0
        %918 = vmatprep.subr.mxu0 0.0
        %919 = vmatpush1.xpose.msra.mxu0 0.0
        %920 = vmatprep.subr.mxu0 0.0
        %921 = vmatpush1.xpose.msra.mxu0 0.0
        %922 = vmatprep.subr.mxu0 0.0
        %923 = vmatpush1.xpose.msra.mxu0 0.0
        %924 = vmatprep.subr.mxu0 0.0
        %925 = vmatpush1.xpose.msra.mxu0 0.0
        %926 = vmatprep.subr.mxu0 0.0
        %927 = vmatpush1.xpose.msra.mxu0 0.0
        %928 = vmatprep.mubr.f32.mxu0 0.0
        %929 = vmatmul.mubr.f32.gmra.mrb[0].mxu0 %v860
        %v930 = vpop.f32.mrb[0].mxu0
        %v931 = vadd.f32 0.0, %v930
        %v932 = vpop.f32.mrb[0].mxu0
        %933 = vdwg.mxu0
        %v934 = vsel %vm695, %v931, -inf
        %935 = vmax.xlane.f32.xlu0 %v934
        %v936 = vpop.xlane.xlu0 %935
        %v937 = vsub.f32 %v931, %v936
        %v938 = vmul.f32 %v937, 1.442695
        %v939 = vpow.pop %v938
        %v940 = vsel %vm695, %v939, 0.0
        %941 = vadd.xlane.f32.xlu0 %v940
        %v942 = vpop.xlane.xlu0 %941
        %v943 = vrcp.pop %v942
        %v944 = vmul.f32 %v939, %v943
        %946 = vrot.lane.b32.xlu0 %v687, 120
        %v947 = vpop.permute.xlu0 %946
        %v950 = vsel %vm695, %v944, 0
        %952 = vmatprep.subr.mxu0 0.0
        %953 = vmatpush1.msra.mxu0 %v947
        %954 = vmatprep.subr.mxu0 0.0
        %955 = vmatpush1.msra.mxu0 0.0
        %956 = vmatprep.subr.mxu0 0.0
        %957 = vmatpush1.msra.mxu0 0.0
        %958 = vmatprep.subr.mxu0 0.0
        %959 = vmatpush1.msra.mxu0 0.0
        %960 = vmatprep.subr.mxu0 0.0
        %961 = vmatpush1.msra.mxu0 0.0
        %962 = vmatprep.subr.mxu0 0.0
        %963 = vmatpush1.msra.mxu0 0.0
        %964 = vmatprep.subr.mxu0 0.0
        %965 = vmatpush1.msra.mxu0 0.0
        %966 = vmatprep.subr.mxu0 0.0
        %967 = vmatpush1.msra.mxu0 0.0
        %968 = vmatprep.subr.mxu0 0.0
        %969 = vmatpush1.msra.mxu0 0.0
        %970 = vmatprep.subr.mxu0 0.0
        %971 = vmatpush1.msra.mxu0 0.0
        %972 = vmatprep.subr.mxu0 0.0
        %973 = vmatpush1.msra.mxu0 0.0
        %974 = vmatprep.subr.mxu0 0.0
        %975 = vmatpush1.msra.mxu0 0.0
        %976 = vmatprep.subr.mxu0 0.0
        %977 = vmatpush1.msra.mxu0 0.0
        %978 = vmatprep.subr.mxu0 0.0
        %979 = vmatpush1.msra.mxu0 0.0
        %980 = vmatprep.subr.mxu0 0.0
        %981 = vmatpush1.msra.mxu0 0.0
        %982 = vmatprep.subr.mxu0 0.0
        %983 = vmatpush1.msra.mxu0 0.0
        %984 = vmatprep.subr.mxu0 0.0
        %985 = vmatpush1.msra.mxu0 0.0
        %986 = vmatprep.subr.mxu0 0.0
        %987 = vmatpush1.msra.mxu0 0.0
        %988 = vmatprep.subr.mxu0 0.0
        %989 = vmatpush1.msra.mxu0 0.0
        %990 = vmatprep.subr.mxu0 0.0
        %991 = vmatpush1.msra.mxu0 0.0
        %992 = vmatprep.subr.mxu0 0.0
        %993 = vmatpush1.msra.mxu0 0.0
        %994 = vmatprep.subr.mxu0 0.0
        %995 = vmatpush1.msra.mxu0 0.0
        %996 = vmatprep.subr.mxu0 0.0
        %997 = vmatpush1.msra.mxu0 0.0
        %998 = vmatprep.subr.mxu0 0.0
        %999 = vmatpush1.msra.mxu0 0.0
        %1000 = vmatprep.subr.mxu0 0.0
        %1001 = vmatpush1.msra.mxu0 0.0
        %1002 = vmatprep.subr.mxu0 0.0
        %1003 = vmatpush1.msra.mxu0 0.0
        %1004 = vmatprep.subr.mxu0 0.0
        %1005 = vmatpush1.msra.mxu0 0.0
        %1006 = vmatprep.subr.mxu0 0.0
        %1007 = vmatpush1.msra.mxu0 0.0
        %1008 = vmatprep.subr.mxu0 0.0
        %1009 = vmatpush1.msra.mxu0 0.0
        %1010 = vmatprep.subr.mxu0 0.0
        %1011 = vmatpush1.msra.mxu0 0.0
        %1012 = vmatprep.subr.mxu0 0.0
        %1013 = vmatpush1.msra.mxu0 0.0
        %1014 = vmatprep.subr.mxu0 0.0
        %1015 = vmatpush1.msra.mxu0 0.0
        %1016 = vmatprep.mubr.f32.mxu0 0.0
        %1017 = vmatmul.mubr.f32.gmra.mrb[0].mxu0 %v950
        %v1018 = vpop.f32.mrb[0].mxu0
        %v1019 = vadd.f32 0.0, %v1018
        %v1020 = vpop.f32.mrb[0].mxu0
        %1021 = vdwg.mxu0
        %1026 = vrot.lane.b32.xlu0 %v691, 120
        %v1027 = vpop.permute.xlu0 %1026
        %1028 = vrot.lane.b32.xlu0 %v692, 120
        %v1029 = vpop.permute.xlu0 %1028
        %1030 = vrot.lane.b32.xlu0 %v693, 120
        %v1031 = vpop.permute.xlu0 %1030
        %1032 = vrot.lane.b32.xlu0 %v694, 120
        %v1033 = vpop.permute.xlu0 %1032
        %v1035 = vsel %vm695, %v1019, 0
        %v1037 = vsel %vm695, %v1027, 0
        %v1039 = vsel %vm695, %v1029, 0
        %v1041 = vsel %vm695, %v1031, 0
        %v1043 = vsel %vm695, %v1033, 0
        %1045 = vmatprep.subr.mxu0 0.0
        %1046 = vmatpush1.xpose.msra.mxu0 %v1037
        %1047 = vmatprep.subr.mxu0 0.0
        %1048 = vmatpush1.xpose.msra.mxu0 %v1039
        %1049 = vmatprep.subr.mxu0 0.0
        %1050 = vmatpush1.xpose.msra.mxu0 %v1041
        %1051 = vmatprep.subr.mxu0 0.0
        %1052 = vmatpush1.xpose.msra.mxu0 %v1043
        %1053 = vmatprep.subr.mxu0 0.0
        %1054 = vmatpush1.xpose.msra.mxu0 0.0
        %1055 = vmatprep.subr.mxu0 0.0
        %1056 = vmatpush1.xpose.msra.mxu0 0.0
        %1057 = vmatprep.subr.mxu0 0.0
        %1058 = vmatpush1.xpose.msra.mxu0 0.0
        %1059 = vmatprep.subr.mxu0 0.0
        %1060 = vmatpush1.xpose.msra.mxu0 0.0
        %1061 = vmatprep.subr.mxu0 0.0
        %1062 = vmatpush1.xpose.msra.mxu0 0.0
        %1063 = vmatprep.subr.mxu0 0.0
        %1064 = vmatpush1.xpose.msra.mxu0 0.0
        %1065 = vmatprep.subr.mxu0 0.0
        %1066 = vmatpush1.xpose.msra.mxu0 0.0
        %1067 = vmatprep.subr.mxu0 0.0
        %1068 = vmatpush1.xpose.msra.mxu0 0.0
        %1069 = vmatprep.subr.mxu0 0.0
        %1070 = vmatpush1.xpose.msra.mxu0 0.0
        %1071 = vmatprep.subr.mxu0 0.0
        %1072 = vmatpush1.xpose.msra.mxu0 0.0
        %1073 = vmatprep.subr.mxu0 0.0
        %1074 = vmatpush1.xpose.msra.mxu0 0.0
        %1075 = vmatprep.subr.mxu0 0.0
        %1076 = vmatpush1.xpose.msra.mxu0 0.0
        %1077 = vmatprep.subr.mxu0 0.0
        %1078 = vmatpush1.xpose.msra.mxu0 0.0
        %1079 = vmatprep.subr.mxu0 0.0
        %1080 = vmatpush1.xpose.msra.mxu0 0.0
        %1081 = vmatprep.subr.mxu0 0.0
        %1082 = vmatpush1.xpose.msra.mxu0 0.0
        %1083 = vmatprep.subr.mxu0 0.0
        %1084 = vmatpush1.xpose.msra.mxu0 0.0
        %1085 = vmatprep.subr.mxu0 0.0
        %1086 = vmatpush1.xpose.msra.mxu0 0.0
        %1087 = vmatprep.subr.mxu0 0.0
        %1088 = vmatpush1.xpose.msra.mxu0 0.0
        %1089 = vmatprep.subr.mxu0 0.0
        %1090 = vmatpush1.xpose.msra.mxu0 0.0
        %1091 = vmatprep.subr.mxu0 0.0
        %1092 = vmatpush1.xpose.msra.mxu0 0.0
        %1093 = vmatprep.subr.mxu0 0.0
        %1094 = vmatpush1.xpose.msra.mxu0 0.0
        %1095 = vmatprep.subr.mxu0 0.0
        %1096 = vmatpush1.xpose.msra.mxu0 0.0
        %1097 = vmatprep.subr.mxu0 0.0
        %1098 = vmatpush1.xpose.msra.mxu0 0.0
        %1099 = vmatprep.subr.mxu0 0.0
        %1100 = vmatpush1.xpose.msra.mxu0 0.0
        %1101 = vmatprep.subr.mxu0 0.0
        %1102 = vmatpush1.xpose.msra.mxu0 0.0
        %1103 = vmatprep.subr.mxu0 0.0
        %1104 = vmatpush1.xpose.msra.mxu0 0.0
        %1105 = vmatprep.subr.mxu0 0.0
        %1106 = vmatpush1.xpose.msra.mxu0 0.0
        %1107 = vmatprep.subr.mxu0 0.0
        %1108 = vmatpush1.xpose.msra.mxu0 0.0
        %1109 = vmatprep.mubr.f32.mxu0 0.0
        %1110 = vmatmul.mubr.f32.gmra.mrb[0].mxu0 %v1035
        %v1111 = vpop.f32.mrb[0].mxu0
        %v1112 = vadd.f32 0.0, %v1111
        %v1113 = vpop.f32.mrb[0].mxu0
        %1114 = vdwg.mxu0
        %v1116 = vsel %vm695, %v853, 0
        %v1118 = vsel %vm695, %v691, 0
        %v1120 = vsel %vm695, %v692, 0
        %v1122 = vsel %vm695, %v693, 0
        %v1124 = vsel %vm695, %v694, 0
        %1126 = vmatprep.subr.mxu0 0.0
        %1127 = vmatpush1.xpose.msra.mxu0 %v1118
        %1128 = vmatprep.subr.mxu0 0.0
        %1129 = vmatpush1.xpose.msra.mxu0 %v1120
        %1130 = vmatprep.subr.mxu0 0.0
        %1131 = vmatpush1.xpose.msra.mxu0 %v1122
        %1132 = vmatprep.subr.mxu0 0.0
        %1133 = vmatpush1.xpose.msra.mxu0 %v1124
        %1134 = vmatprep.subr.mxu0 0.0
        %1135 = vmatpush1.xpose.msra.mxu0 0.0
        %1136 = vmatprep.subr.mxu0 0.0
        %1137 = vmatpush1.xpose.msra.mxu0 0.0
        %1138 = vmatprep.subr.mxu0 0.0
        %1139 = vmatpush1.xpose.msra.mxu0 0.0
        %1140 = vmatprep.subr.mxu0 0.0
        %1141 = vmatpush1.xpose.msra.mxu0 0.0
        %1142 = vmatprep.subr.mxu0 0.0
        %1143 = vmatpush1.xpose.msra.mxu0 0.0
        %1144 = vmatprep.subr.mxu0 0.0
        %1145 = vmatpush1.xpose.msra.mxu0 0.0
        %1146 = vmatprep.subr.mxu0 0.0
        %1147 = vmatpush1.xpose.msra.mxu0 0.0
        %1148 = vmatprep.subr.mxu0 0.0
        %1149 = vmatpush1.xpose.msra.mxu0 0.0
        %1150 = vmatprep.subr.mxu0 0.0
        %1151 = vmatpush1.xpose.msra.mxu0 0.0
        %1152 = vmatprep.subr.mxu0 0.0
        %1153 = vmatpush1.xpose.msra.mxu0 0.0
        %1154 = vmatprep.subr.mxu0 0.0
        %1155 = vmatpush1.xpose.msra.mxu0 0.0
        %1156 = vmatprep.subr.mxu0 0.0
        %1157 = vmatpush1.xpose.msra.mxu0 0.0
        %1158 = vmatprep.subr.mxu0 0.0
        %1159 = vmatpush1.xpose.msra.mxu0 0.0
        %1160 = vmatprep.subr.mxu0 0.0
        %1161 = vmatpush1.xpose.msra.mxu0 0.0
        %1162 = vmatprep.subr.mxu0 0.0
        %1163 = vmatpush1.xpose.msra.mxu0 0.0
        %1164 = vmatprep.subr.mxu0 0.0
        %1165 = vmatpush1.xpose.msra.mxu0 0.0
        %1166 = vmatprep.subr.mxu0 0.0
        %1167 = vmatpush1.xpose.msra.mxu0 0.0
        %1168 = vmatprep.subr.mxu0 0.0
        %1169 = vmatpush1.xpose.msra.mxu0 0.0
        %1170 = vmatprep.subr.mxu0 0.0
        %1171 = vmatpush1.xpose.msra.mxu0 0.0
        %1172 = vmatprep.subr.mxu0 0.0
        %1173 = vmatpush1.xpose.msra.mxu0 0.0
        %1174 = vmatprep.subr.mxu0 0.0
        %1175 = vmatpush1.xpose.msra.mxu0 0.0
        %1176 = vmatprep.subr.mxu0 0.0
        %1177 = vmatpush1.xpose.msra.mxu0 0.0
        %1178 = vmatprep.subr.mxu0 0.0
        %1179 = vmatpush1.xpose.msra.mxu0 0.0
        %1180 = vmatprep.subr.mxu0 0.0
        %1181 = vmatpush1.xpose.msra.mxu0 0.0
        %1182 = vmatprep.subr.mxu0 0.0
        %1183 = vmatpush1.xpose.msra.mxu0 0.0
        %1184 = vmatprep.subr.mxu0 0.0
        %1185 = vmatpush1.xpose.msra.mxu0 0.0
        %1186 = vmatprep.subr.mxu0 0.0
        %1187 = vmatpush1.xpose.msra.mxu0 0.0
        %1188 = vmatprep.subr.mxu0 0.0
        %1189 = vmatpush1.xpose.msra.mxu0 0.0
        %1190 = vmatprep.mubr.f32.mxu0 0.0
        %1191 = vmatmul.mubr.f32.gmra.mrb[0].mxu0 %v1116
        %v1192 = vpop.f32.mrb[0].mxu0
        %v1193 = vadd.f32 %v1112, %v1192
        %v1194 = vpop.f32.mrb[0].mxu0
        %1195 = vdwg.mxu0
        %1196 = vrot.lane.b32.xlu0 %v690, 112
        %v1197 = vpop.permute.xlu0 %1196
        %1198 = vrot.lane.b32.xlu0 %v594, 112
        %v1199 = vpop.permute.xlu0 %1198
        %v1200 = vsel %vm695, %v1197, 0
        %v1202 = vsel %vm695, %v1199, 0
        %1204 = vmatprep.subr.mxu0 0.0
        %1205 = vmatpush1.xpose.msra.mxu0 %v1202
        %1206 = vmatprep.subr.mxu0 0.0
        %1207 = vmatpush1.xpose.msra.mxu0 0.0
        %1208 = vmatprep.subr.mxu0 0.0
        %1209 = vmatpush1.xpose.msra.mxu0 0.0
        %1210 = vmatprep.subr.mxu0 0.0
        %1211 = vmatpush1.xpose.msra.mxu0 0.0
        %1212 = vmatprep.subr.mxu0 0.0
        %1213 = vmatpush1.xpose.msra.mxu0 0.0
        %1214 = vmatprep.subr.mxu0 0.0
        %1215 = vmatpush1.xpose.msra.mxu0 0.0
        %1216 = vmatprep.subr.mxu0 0.0
        %1217 = vmatpush1.xpose.msra.mxu0 0.0
        %1218 = vmatprep.subr.mxu0 0.0
        %1219 = vmatpush1.xpose.msra.mxu0 0.0
        %1220 = vmatprep.subr.mxu0 0.0
        %1221 = vmatpush1.xpose.msra.mxu0 0.0
        %1222 = vmatprep.subr.mxu0 0.0
        %1223 = vmatpush1.xpose.msra.mxu0 0.0
        %1224 = vmatprep.subr.mxu0 0.0
        %1225 = vmatpush1.xpose.msra.mxu0 0.0
        %1226 = vmatprep.subr.mxu0 0.0
        %1227 = vmatpush1.xpose.msra.mxu0 0.0
        %1228 = vmatprep.subr.mxu0 0.0
        %1229 = vmatpush1.xpose.msra.mxu0 0.0
        %1230 = vmatprep.subr.mxu0 0.0
        %1231 = vmatpush1.xpose.msra.mxu0 0.0
        %1232 = vmatprep.subr.mxu0 0.0
        %1233 = vmatpush1.xpose.msra.mxu0 0.0
        %1234 = vmatprep.subr.mxu0 0.0
        %1235 = vmatpush1.xpose.msra.mxu0 0.0
        %1236 = vmatprep.subr.mxu0 0.0
        %1237 = vmatpush1.xpose.msra.mxu0 0.0
        %1238 = vmatprep.subr.mxu0 0.0
        %1239 = vmatpush1.xpose.msra.mxu0 0.0
        %1240 = vmatprep.subr.mxu0 0.0
        %1241 = vmatpush1.xpose.msra.mxu0 0.0
        %1242 = vmatprep.subr.mxu0 0.0
        %1243 = vmatpush1.xpose.msra.mxu0 0.0
        %1244 = vmatprep.subr.mxu0 0.0
        %1245 = vmatpush1.xpose.msra.mxu0 0.0
        %1246 = vmatprep.subr.mxu0 0.0
        %1247 = vmatpush1.xpose.msra.mxu0 0.0
        %1248 = vmatprep.subr.mxu0 0.0
        %1249 = vmatpush1.xpose.msra.mxu0 0.0
        %1250 = vmatprep.subr.mxu0 0.0
        %1251 = vmatpush1.xpose.msra.mxu0 0.0
        %1252 = vmatprep.subr.mxu0 0.0
        %1253 = vmatpush1.xpose.msra.mxu0 0.0
        %1254 = vmatprep.subr.mxu0 0.0
        %1255 = vmatpush1.xpose.msra.mxu0 0.0
        %1256 = vmatprep.subr.mxu0 0.0
        %1257 = vmatpush1.xpose.msra.mxu0 0.0
        %1258 = vmatprep.subr.mxu0 0.0
        %1259 = vmatpush1.xpose.msra.mxu0 0.0
        %1260 = vmatprep.subr.mxu0 0.0
        %1261 = vmatpush1.xpose.msra.mxu0 0.0
        %1262 = vmatprep.subr.mxu0 0.0
        %1263 = vmatpush1.xpose.msra.mxu0 0.0
        %1264 = vmatprep.subr.mxu0 0.0
        %1265 = vmatpush1.xpose.msra.mxu0 0.0
        %1266 = vmatprep.subr.mxu0 0.0
        %1267 = vmatpush1.xpose.msra.mxu0 0.0
        %1268 = vmatprep.mubr.f32.mxu0 0.0
        %1269 = vmatmul.mubr.f32.gmra.mrb[0].mxu0 %v1200
        %v1270 = vpop.f32.mrb[0].mxu0
        %v1271 = vadd.f32 0.0, %v1270
        %v1272 = vpop.f32.mrb[0].mxu0
        %1273 = vdwg.mxu0
        %v1274 = vsel %vm695, %v1271, -inf
        %1275 = vmax.xlane.f32.xlu0 %v1274
        %v1276 = vpop.xlane.xlu0 %1275
        %v1277 = vsub.f32 %v1271, %v1276
        %v1278 = vmul.f32 %v1277, 1.442695
        %v1279 = vpow.pop %v1278
        %v1280 = vsel %vm695, %v1279, 0.0
        %1281 = vadd.xlane.f32.xlu0 %v1280
        %v1282 = vpop.xlane.xlu0 %1281
        %v1283 = vrcp.pop %v1282
        %v1284 = vmul.f32 %v1279, %v1283
        %1285 = vrot.lane.b32.xlu0 %v687, 112
        %v1286 = vpop.permute.xlu0 %1285
        %v1289 = vsel %vm695, %v1284, 0
        %1291 = vmatprep.subr.mxu0 0.0
        %1292 = vmatpush1.msra.mxu0 %v1286
        %1293 = vmatprep.subr.mxu0 0.0
        %1294 = vmatpush1.msra.mxu0 0.0
        %1295 = vmatprep.subr.mxu0 0.0
        %1296 = vmatpush1.msra.mxu0 0.0
        %1297 = vmatprep.subr.mxu0 0.0
        %1298 = vmatpush1.msra.mxu0 0.0
        %1299 = vmatprep.subr.mxu0 0.0
        %1300 = vmatpush1.msra.mxu0 0.0
        %1301 = vmatprep.subr.mxu0 0.0
        %1302 = vmatpush1.msra.mxu0 0.0
        %1303 = vmatprep.subr.mxu0 0.0
        %1304 = vmatpush1.msra.mxu0 0.0
        %1305 = vmatprep.subr.mxu0 0.0
        %1306 = vmatpush1.msra.mxu0 0.0
        %1307 = vmatprep.subr.mxu0 0.0
        %1308 = vmatpush1.msra.mxu0 0.0
        %1309 = vmatprep.subr.mxu0 0.0
        %1310 = vmatpush1.msra.mxu0 0.0
        %1311 = vmatprep.subr.mxu0 0.0
        %1312 = vmatpush1.msra.mxu0 0.0
        %1313 = vmatprep.subr.mxu0 0.0
        %1314 = vmatpush1.msra.mxu0 0.0
        %1315 = vmatprep.subr.mxu0 0.0
        %1316 = vmatpush1.msra.mxu0 0.0
        %1317 = vmatprep.subr.mxu0 0.0
        %1318 = vmatpush1.msra.mxu0 0.0
        %1319 = vmatprep.subr.mxu0 0.0
        %1320 = vmatpush1.msra.mxu0 0.0
        %1321 = vmatprep.subr.mxu0 0.0
        %1322 = vmatpush1.msra.mxu0 0.0
        %1323 = vmatprep.subr.mxu0 0.0
        %1324 = vmatpush1.msra.mxu0 0.0
        %1325 = vmatprep.subr.mxu0 0.0
        %1326 = vmatpush1.msra.mxu0 0.0
        %1327 = vmatprep.subr.mxu0 0.0
        %1328 = vmatpush1.msra.mxu0 0.0
        %1329 = vmatprep.subr.mxu0 0.0
        %1330 = vmatpush1.msra.mxu0 0.0
        %1331 = vmatprep.subr.mxu0 0.0
        %1332 = vmatpush1.msra.mxu0 0.0
        %1333 = vmatprep.subr.mxu0 0.0
        %1334 = vmatpush1.msra.mxu0 0.0
        %1335 = vmatprep.subr.mxu0 0.0
        %1336 = vmatpush1.msra.mxu0 0.0
        %1337 = vmatprep.subr.mxu0 0.0
        %1338 = vmatpush1.msra.mxu0 0.0
        %1339 = vmatprep.subr.mxu0 0.0
        %1340 = vmatpush1.msra.mxu0 0.0
        %1341 = vmatprep.subr.mxu0 0.0
        %1342 = vmatpush1.msra.mxu0 0.0
        %1343 = vmatprep.subr.mxu0 0.0
        %1344 = vmatpush1.msra.mxu0 0.0
        %1345 = vmatprep.subr.mxu0 0.0
        %1346 = vmatpush1.msra.mxu0 0.0
        %1347 = vmatprep.subr.mxu0 0.0
        %1348 = vmatpush1.msra.mxu0 0.0
        %1349 = vmatprep.subr.mxu0 0.0
        %1350 = vmatpush1.msra.mxu0 0.0
        %1351 = vmatprep.subr.mxu0 0.0
        %1352 = vmatpush1.msra.mxu0 0.0
        %1353 = vmatprep.subr.mxu0 0.0
        %1354 = vmatpush1.msra.mxu0 0.0
        %1355 = vmatprep.mubr.f32.mxu0 0.0
        %1356 = vmatmul.mubr.f32.gmra.mrb[0].mxu0 %v1289
        %v1357 = vpop.f32.mrb[0].mxu0
        %v1358 = vadd.f32 0.0, %v1357
        %v1359 = vpop.f32.mrb[0].mxu0
        %1360 = vdwg.mxu0
        %1361 = vrot.lane.b32.xlu0 %v691, 112
        %v1362 = vpop.permute.xlu0 %1361
        %1363 = vrot.lane.b32.xlu0 %v692, 112
        %v1364 = vpop.permute.xlu0 %1363
        %1365 = vrot.lane.b32.xlu0 %v693, 112
        %v1366 = vpop.permute.xlu0 %1365
        %1367 = vrot.lane.b32.xlu0 %v694, 112
        %v1368 = vpop.permute.xlu0 %1367
        %v1370 = vsel %vm695, %v1358, 0
        %v1372 = vsel %vm695, %v1362, 0
        %v1374 = vsel %vm695, %v1364, 0
        %v1376 = vsel %vm695, %v1366, 0
        %v1378 = vsel %vm695, %v1368, 0
        %1380 = vmatprep.subr.mxu0 0.0
        %1381 = vmatpush1.xpose.msra.mxu0 %v1372
        %1382 = vmatprep.subr.mxu0 0.0
        %1383 = vmatpush1.xpose.msra.mxu0 %v1374
        %1384 = vmatprep.subr.mxu0 0.0
        %1385 = vmatpush1.xpose.msra.mxu0 %v1376
        %1386 = vmatprep.subr.mxu0 0.0
        %1387 = vmatpush1.xpose.msra.mxu0 %v1378
        %1388 = vmatprep.subr.mxu0 0.0
        %1389 = vmatpush1.xpose.msra.mxu0 0.0
        %1390 = vmatprep.subr.mxu0 0.0
        %1391 = vmatpush1.xpose.msra.mxu0 0.0
        %1392 = vmatprep.subr.mxu0 0.0
        %1393 = vmatpush1.xpose.msra.mxu0 0.0
        %1394 = vmatprep.subr.mxu0 0.0
        %1395 = vmatpush1.xpose.msra.mxu0 0.0
        %1396 = vmatprep.subr.mxu0 0.0
        %1397 = vmatpush1.xpose.msra.mxu0 0.0
        %1398 = vmatprep.subr.mxu0 0.0
        %1399 = vmatpush1.xpose.msra.mxu0 0.0
        %1400 = vmatprep.subr.mxu0 0.0
        %1401 = vmatpush1.xpose.msra.mxu0 0.0
        %1402 = vmatprep.subr.mxu0 0.0
        %1403 = vmatpush1.xpose.msra.mxu0 0.0
        %1404 = vmatprep.subr.mxu0 0.0
        %1405 = vmatpush1.xpose.msra.mxu0 0.0
        %1406 = vmatprep.subr.mxu0 0.0
        %1407 = vmatpush1.xpose.msra.mxu0 0.0
        %1408 = vmatprep.subr.mxu0 0.0
        %1409 = vmatpush1.xpose.msra.mxu0 0.0
        %1410 = vmatprep.subr.mxu0 0.0
        %1411 = vmatpush1.xpose.msra.mxu0 0.0
        %1412 = vmatprep.subr.mxu0 0.0
        %1413 = vmatpush1.xpose.msra.mxu0 0.0
        %1414 = vmatprep.subr.mxu0 0.0
        %1415 = vmatpush1.xpose.msra.mxu0 0.0
        %1416 = vmatprep.subr.mxu0 0.0
        %1417 = vmatpush1.xpose.msra.mxu0 0.0
        %1418 = vmatprep.subr.mxu0 0.0
        %1419 = vmatpush1.xpose.msra.mxu0 0.0
        %1420 = vmatprep.subr.mxu0 0.0
        %1421 = vmatpush1.xpose.msra.mxu0 0.0
        %1422 = vmatprep.subr.mxu0 0.0
        %1423 = vmatpush1.xpose.msra.mxu0 0.0
        %1424 = vmatprep.subr.mxu0 0.0
        %1425 = vmatpush1.xpose.msra.mxu0 0.0
        %1426 = vmatprep.subr.mxu0 0.0
        %1427 = vmatpush1.xpose.msra.mxu0 0.0
        %1428 = vmatprep.subr.mxu0 0.0
        %1429 = vmatpush1.xpose.msra.mxu0 0.0
        %1430 = vmatprep.subr.mxu0 0.0
        %1431 = vmatpush1.xpose.msra.mxu0 0.0
        %1432 = vmatprep.subr.mxu0 0.0
        %1433 = vmatpush1.xpose.msra.mxu0 0.0
        %1434 = vmatprep.subr.mxu0 0.0
        %1435 = vmatpush1.xpose.msra.mxu0 0.0
        %1436 = vmatprep.subr.mxu0 0.0
        %1437 = vmatpush1.xpose.msra.mxu0 0.0
        %1438 = vmatprep.subr.mxu0 0.0
        %1439 = vmatpush1.xpose.msra.mxu0 0.0
        %1440 = vmatprep.subr.mxu0 0.0
        %1441 = vmatpush1.xpose.msra.mxu0 0.0
        %1442 = vmatprep.subr.mxu0 0.0
        %1443 = vmatpush1.xpose.msra.mxu0 0.0
        %1444 = vmatprep.mubr.f32.mxu0 0.0
        %1445 = vmatmul.mubr.f32.gmra.mrb[0].mxu0 %v1370
        %v1446 = vpop.f32.mrb[0].mxu0
        %v1447 = vadd.f32 0.0, %v1446
        %v1448 = vpop.f32.mrb[0].mxu0
        %1449 = vdwg.mxu0
        %v1450 = vadd.f32 %v1193, %v1447
        %1451 = vrot.lane.b32.xlu0 %v690, 104
        %v1452 = vpop.permute.xlu0 %1451
        %1453 = vrot.lane.b32.xlu0 %v594, 104
        %v1454 = vpop.permute.xlu0 %1453
        %v1455 = vsel %vm695, %v1452, 0
        %v1457 = vsel %vm695, %v1454, 0
        %1459 = vmatprep.subr.mxu0 0.0
        %1460 = vmatpush1.xpose.msra.mxu0 %v1457
        %1461 = vmatprep.subr.mxu0 0.0
        %1462 = vmatpush1.xpose.msra.mxu0 0.0
        %1463 = vmatprep.subr.mxu0 0.0
        %1464 = vmatpush1.xpose.msra.mxu0 0.0
        %1465 = vmatprep.subr.mxu0 0.0
        %1466 = vmatpush1.xpose.msra.mxu0 0.0
        %1467 = vmatprep.subr.mxu0 0.0
        %1468 = vmatpush1.xpose.msra.mxu0 0.0
        %1469 = vmatprep.subr.mxu0 0.0
        %1470 = vmatpush1.xpose.msra.mxu0 0.0
        %1471 = vmatprep.subr.mxu0 0.0
        %1472 = vmatpush1.xpose.msra.mxu0 0.0
        %1473 = vmatprep.subr.mxu0 0.0
        %1474 = vmatpush1.xpose.msra.mxu0 0.0
        %1475 = vmatprep.subr.mxu0 0.0
        %1476 = vmatpush1.xpose.msra.mxu0 0.0
        %1477 = vmatprep.subr.mxu0 0.0
        %1478 = vmatpush1.xpose.msra.mxu0 0.0
        %1479 = vmatprep.subr.mxu0 0.0
        %1480 = vmatpush1.xpose.msra.mxu0 0.0
        %1481 = vmatprep.subr.mxu0 0.0
        %1482 = vmatpush1.xpose.msra.mxu0 0.0
        %1483 = vmatprep.subr.mxu0 0.0
        %1484 = vmatpush1.xpose.msra.mxu0 0.0
        %1485 = vmatprep.subr.mxu0 0.0
        %1486 = vmatpush1.xpose.msra.mxu0 0.0
        %1487 = vmatprep.subr.mxu0 0.0
        %1488 = vmatpush1.xpose.msra.mxu0 0.0
        %1489 = vmatprep.subr.mxu0 0.0
        %1490 = vmatpush1.xpose.msra.mxu0 0.0
        %1491 = vmatprep.subr.mxu0 0.0
        %1492 = vmatpush1.xpose.msra.mxu0 0.0
        %1493 = vmatprep.subr.mxu0 0.0
        %1494 = vmatpush1.xpose.msra.mxu0 0.0
        %1495 = vmatprep.subr.mxu0 0.0
        %1496 = vmatpush1.xpose.msra.mxu0 0.0
        %1497 = vmatprep.subr.mxu0 0.0
        %1498 = vmatpush1.xpose.msra.mxu0 0.0
        %1499 = vmatprep.subr.mxu0 0.0
        %1500 = vmatpush1.xpose.msra.mxu0 0.0
        %1501 = vmatprep.subr.mxu0 0.0
        %1502 = vmatpush1.xpose.msra.mxu0 0.0
        %1503 = vmatprep.subr.mxu0 0.0
        %1504 = vmatpush1.xpose.msra.mxu0 0.0
        %1505 = vmatprep.subr.mxu0 0.0
        %1506 = vmatpush1.xpose.msra.mxu0 0.0
        %1507 = vmatprep.subr.mxu0 0.0
        %1508 = vmatpush1.xpose.msra.mxu0 0.0
        %1509 = vmatprep.subr.mxu0 0.0
        %1510 = vmatpush1.xpose.msra.mxu0 0.0
        %1511 = vmatprep.subr.mxu0 0.0
        %1512 = vmatpush1.xpose.msra.mxu0 0.0
        %1513 = vmatprep.subr.mxu0 0.0
        %1514 = vmatpush1.xpose.msra.mxu0 0.0
        %1515 = vmatprep.subr.mxu0 0.0
        %1516 = vmatpush1.xpose.msra.mxu0 0.0
        %1517 = vmatprep.subr.mxu0 0.0
        %1518 = vmatpush1.xpose.msra.mxu0 0.0
        %1519 = vmatprep.subr.mxu0 0.0
        %1520 = vmatpush1.xpose.msra.mxu0 0.0
        %1521 = vmatprep.subr.mxu0 0.0
        %1522 = vmatpush1.xpose.msra.mxu0 0.0
        %1523 = vmatprep.mubr.f32.mxu0 0.0
        %1524 = vmatmul.mubr.f32.gmra.mrb[0].mxu0 %v1455
        %v1525 = vpop.f32.mrb[0].mxu0
        %v1526 = vadd.f32 0.0, %v1525
        %v1527 = vpop.f32.mrb[0].mxu0
        %1528 = vdwg.mxu0
        %v1529 = vsel %vm695, %v1526, -inf
        %1530 = vmax.xlane.f32.xlu0 %v1529
        %v1531 = vpop.xlane.xlu0 %1530
        %v1532 = vsub.f32 %v1526, %v1531
        %v1533 = vmul.f32 %v1532, 1.442695
        %v1534 = vpow.pop %v1533
        %v1535 = vsel %vm695, %v1534, 0.0
        %1536 = vadd.xlane.f32.xlu0 %v1535
        %v1537 = vpop.xlane.xlu0 %1536
        %v1538 = vrcp.pop %v1537
        %v1539 = vmul.f32 %v1534, %v1538
        %1540 = vrot.lane.b32.xlu0 %v687, 104
        %v1541 = vpop.permute.xlu0 %1540
        %v1544 = vsel %vm695, %v1539, 0
        %1546 = vmatprep.subr.mxu0 0.0
        %1547 = vmatpush1.msra.mxu0 %v1541
        %1548 = vmatprep.subr.mxu0 0.0
        %1549 = vmatpush1.msra.mxu0 0.0
        %1550 = vmatprep.subr.mxu0 0.0
        %1551 = vmatpush1.msra.mxu0 0.0
        %1552 = vmatprep.subr.mxu0 0.0
        %1553 = vmatpush1.msra.mxu0 0.0
        %1554 = vmatprep.subr.mxu0 0.0
        %1555 = vmatpush1.msra.mxu0 0.0
        %1556 = vmatprep.subr.mxu0 0.0
        %1557 = vmatpush1.msra.mxu0 0.0
        %1558 = vmatprep.subr.mxu0 0.0
        %1559 = vmatpush1.msra.mxu0 0.0
        %1560 = vmatprep.subr.mxu0 0.0
        %1561 = vmatpush1.msra.mxu0 0.0
        %1562 = vmatprep.subr.mxu0 0.0
        %1563 = vmatpush1.msra.mxu0 0.0
        %1564 = vmatprep.subr.mxu0 0.0
        %1565 = vmatpush1.msra.mxu0 0.0
        %1566 = vmatprep.subr.mxu0 0.0
        %1567 = vmatpush1.msra.mxu0 0.0
        %1568 = vmatprep.subr.mxu0 0.0
        %1569 = vmatpush1.msra.mxu0 0.0
        %1570 = vmatprep.subr.mxu0 0.0
        %1571 = vmatpush1.msra.mxu0 0.0
        %1572 = vmatprep.subr.mxu0 0.0
        %1573 = vmatpush1.msra.mxu0 0.0
        %1574 = vmatprep.subr.mxu0 0.0
        %1575 = vmatpush1.msra.mxu0 0.0
        %1576 = vmatprep.subr.mxu0 0.0
        %1577 = vmatpush1.msra.mxu0 0.0
        %1578 = vmatprep.subr.mxu0 0.0
        %1579 = vmatpush1.msra.mxu0 0.0
        %1580 = vmatprep.subr.mxu0 0.0
        %1581 = vmatpush1.msra.mxu0 0.0
        %1582 = vmatprep.subr.mxu0 0.0
        %1583 = vmatpush1.msra.mxu0 0.0
        %1584 = vmatprep.subr.mxu0 0.0
        %1585 = vmatpush1.msra.mxu0 0.0
        %1586 = vmatprep.subr.mxu0 0.0
        %1587 = vmatpush1.msra.mxu0 0.0
        %1588 = vmatprep.subr.mxu0 0.0
        %1589 = vmatpush1.msra.mxu0 0.0
        %1590 = vmatprep.subr.mxu0 0.0
        %1591 = vmatpush1.msra.mxu0 0.0
        %1592 = vmatprep.subr.mxu0 0.0
        %1593 = vmatpush1.msra.mxu0 0.0
        %1594 = vmatprep.subr.mxu0 0.0
        %1595 = vmatpush1.msra.mxu0 0.0
        %1596 = vmatprep.subr.mxu0 0.0
        %1597 = vmatpush1.msra.mxu0 0.0
        %1598 = vmatprep.subr.mxu0 0.0
        %1599 = vmatpush1.msra.mxu0 0.0
        %1600 = vmatprep.subr.mxu0 0.0
        %1601 = vmatpush1.msra.mxu0 0.0
        %1602 = vmatprep.subr.mxu0 0.0
        %1603 = vmatpush1.msra.mxu0 0.0
        %1604 = vmatprep.subr.mxu0 0.0
        %1605 = vmatpush1.msra.mxu0 0.0
        %1606 = vmatprep.subr.mxu0 0.0
        %1607 = vmatpush1.msra.mxu0 0.0
        %1608 = vmatprep.subr.mxu0 0.0
        %1609 = vmatpush1.msra.mxu0 0.0
        %1610 = vmatprep.mubr.f32.mxu0 0.0
        %1611 = vmatmul.mubr.f32.gmra.mrb[0].mxu0 %v1544
        %v1612 = vpop.f32.mrb[0].mxu0
        %v1613 = vadd.f32 0.0, %v1612
        %v1614 = vpop.f32.mrb[0].mxu0
        %1615 = vdwg.mxu0
        %1616 = vrot.lane.b32.xlu0 %v691, 104
        %v1617 = vpop.permute.xlu0 %1616
        %1618 = vrot.lane.b32.xlu0 %v692, 104
        %v1619 = vpop.permute.xlu0 %1618
        %1620 = vrot.lane.b32.xlu0 %v693, 104
        %v1621 = vpop.permute.xlu0 %1620
        %1622 = vrot.lane.b32.xlu0 %v694, 104
        %v1623 = vpop.permute.xlu0 %1622
        %v1625 = vsel %vm695, %v1613, 0
        %v1627 = vsel %vm695, %v1617, 0
        %v1629 = vsel %vm695, %v1619, 0
        %v1631 = vsel %vm695, %v1621, 0
        %v1633 = vsel %vm695, %v1623, 0
        %1635 = vmatprep.subr.mxu0 0.0
        %1636 = vmatpush1.xpose.msra.mxu0 %v1627
        %1637 = vmatprep.subr.mxu0 0.0
        %1638 = vmatpush1.xpose.msra.mxu0 %v1629
        %1639 = vmatprep.subr.mxu0 0.0
        %1640 = vmatpush1.xpose.msra.mxu0 %v1631
        %1641 = vmatprep.subr.mxu0 0.0
        %1642 = vmatpush1.xpose.msra.mxu0 %v1633
        %1643 = vmatprep.subr.mxu0 0.0
        %1644 = vmatpush1.xpose.msra.mxu0 0.0
        %1645 = vmatprep.subr.mxu0 0.0
        %1646 = vmatpush1.xpose.msra.mxu0 0.0
        %1647 = vmatprep.subr.mxu0 0.0
        %1648 = vmatpush1.xpose.msra.mxu0 0.0
        %1649 = vmatprep.subr.mxu0 0.0
        %1650 = vmatpush1.xpose.msra.mxu0 0.0
        %1651 = vmatprep.subr.mxu0 0.0
        %1652 = vmatpush1.xpose.msra.mxu0 0.0
        %1653 = vmatprep.subr.mxu0 0.0
        %1654 = vmatpush1.xpose.msra.mxu0 0.0
        %1655 = vmatprep.subr.mxu0 0.0
        %1656 = vmatpush1.xpose.msra.mxu0 0.0
        %1657 = vmatprep.subr.mxu0 0.0
        %1658 = vmatpush1.xpose.msra.mxu0 0.0
        %1659 = vmatprep.subr.mxu0 0.0
        %1660 = vmatpush1.xpose.msra.mxu0 0.0
        %1661 = vmatprep.subr.mxu0 0.0
        %1662 = vmatpush1.xpose.msra.mxu0 0.0
        %1663 = vmatprep.subr.mxu0 0.0
        %1664 = vmatpush1.xpose.msra.mxu0 0.0
        %1665 = vmatprep.subr.mxu0 0.0
        %1666 = vmatpush1.xpose.msra.mxu0 0.0
        %1667 = vmatprep.subr.mxu0 0.0
        %1668 = vmatpush1.xpose.msra.mxu0 0.0
        %1669 = vmatprep.subr.mxu0 0.0
        %1670 = vmatpush1.xpose.msra.mxu0 0.0
        %1671 = vmatprep.subr.mxu0 0.0
        %1672 = vmatpush1.xpose.msra.mxu0 0.0
        %1673 = vmatprep.subr.mxu0 0.0
        %1674 = vmatpush1.xpose.msra.mxu0 0.0
        %1675 = vmatprep.subr.mxu0 0.0
        %1676 = vmatpush1.xpose.msra.mxu0 0.0
        %1677 = vmatprep.subr.mxu0 0.0
        %1678 = vmatpush1.xpose.msra.mxu0 0.0
        %1679 = vmatprep.subr.mxu0 0.0
        %1680 = vmatpush1.xpose.msra.mxu0 0.0
        %1681 = vmatprep.subr.mxu0 0.0
        %1682 = vmatpush1.xpose.msra.mxu0 0.0
        %1683 = vmatprep.subr.mxu0 0.0
        %1684 = vmatpush1.xpose.msra.mxu0 0.0
        %1685 = vmatprep.subr.mxu0 0.0
        %1686 = vmatpush1.xpose.msra.mxu0 0.0
        %1687 = vmatprep.subr.mxu0 0.0
        %1688 = vmatpush1.xpose.msra.mxu0 0.0
        %1689 = vmatprep.subr.mxu0 0.0
        %1690 = vmatpush1.xpose.msra.mxu0 0.0
        %1691 = vmatprep.subr.mxu0 0.0
        %1692 = vmatpush1.xpose.msra.mxu0 0.0
        %1693 = vmatprep.subr.mxu0 0.0
        %1694 = vmatpush1.xpose.msra.mxu0 0.0
        %1695 = vmatprep.subr.mxu0 0.0
        %1696 = vmatpush1.xpose.msra.mxu0 0.0
        %1697 = vmatprep.subr.mxu0 0.0
        %1698 = vmatpush1.xpose.msra.mxu0 0.0
        %1699 = vmatprep.mubr.f32.mxu0 0.0
        %1700 = vmatmul.mubr.f32.gmra.mrb[0].mxu0 %v1625
        %v1701 = vpop.f32.mrb[0].mxu0
        %v1702 = vadd.f32 0.0, %v1701
        %v1703 = vpop.f32.mrb[0].mxu0
        %1704 = vdwg.mxu0
        %v1705 = vadd.f32 %v1450, %v1702
        %v1706 = vld [vmem:[%s8] sm:$0x1]
        %v1708 = vlaneseq
        %v1709 = vshrl.u32 %v1708, 7
        %v1710 = vsub.s32 0, %v1709
        %v1711 = vrot.slane %v1706, %v1710
        %v1713 = vadd.f32 %v1705, %v1711
        %1714 = vst.msk [vmem:[%s405] sm:$0xff] %vm418, %v1713
        %s1715 = sand.u32 %s230, 1
        %s1716 = scalar_lea.sflag [#allocation4], %s1715
        %s1717 = sand.u32 %s230, 1
        %s1718 = smul.addr %s1717, 8
        %s1719 = scalar_lea.vmem [#allocation11], %s1718
        // Predicated region
        $region77: #{tpu_custom_call.1} parent=55 // pred_check
          %p1720 = pneg %p240
        $region78: #{tpu_custom_call.1} parent=55 // pred_check_branch
          %1722 = sbr.rel (%p1720) target = $region80
        $region79: #{tpu_custom_call.1} parent=55 // pred_region
          %s1724 = ssub.s32 128, 128
          %1725 = vsyncadd %s1716, %s1724
          %s1726 = smul.addr %s28, 128
          %s1727 = scalar_lea.hbm %s9, %s1726
          %s1729 = sshll.u32 %s1719, 4
          %s1730 = int_to_ptr.vmem [resolvable:$true] %s1729
          %1732 = dma.vmem_to_hbm [thread:$0]  %s1730, 128, %s1727, %s1716
        $region80: #{tpu_custom_call.1} parent=55 // pred_fallthru
          _
      $region56: #{tpu_custom_call.1} parent=5 // pred_fallthru
        _
      %p1733 = scmp.le.s32.totalorder 2, %s23
      // Predicated region
      $region81: #{tpu_custom_call.1} parent=5 // pred_check
        %p1734 = pneg %p1733
      $region82: #{tpu_custom_call.1} parent=5 // pred_check_branch
        %1736 = sbr.rel (%p1734) target = $region84
      $region83: #{tpu_custom_call.1} parent=5 // pred_region
        %s1737 = ssub.s32 %s23, 2
        // Predicated region
        $region85: #{tpu_custom_call.1} parent=83 // pred_check
          %p1738 = pneg %p246
        $region86: #{tpu_custom_call.1} parent=83 // pred_check_branch
          %1740 = sbr.rel (%p1738) target = $region88
        $region87: #{tpu_custom_call.1} parent=83 // pred_region
          %s1741 = sand.u32 %s231, 1
          %s1742 = scalar_lea.sflag [#allocation4], %s1741
          %s1743 = sand.u32 %s231, 1
          %s1744 = smul.addr %s1743, 8
          %s1745 = scalar_lea.vmem [#allocation11], %s1744
          %1746 = dma.done %s1742, 128
        $region88: #{tpu_custom_call.1} parent=83 // pred_fallthru
          _
      $region84: #{tpu_custom_call.1} parent=5 // pred_fallthru
        _
    $region6: #{tpu_custom_call.1} parent=1 // loop_footer
      %s27 = sadd.s32 1, %s23
    $region7: #{tpu_custom_call.1} parent=1 // loop_footer_branch
      %22 = sbr.rel target = $region3
    $region8: #{tpu_custom_call.1} parent=1 // loop_exit
      _
    %1747 = vsyncpa [#allocation3], 1
    %s1748 = scalar_lea.sflag [#allocation3], 1
    %1749 = vsyncpa %s1748, 1
    %1750 = vsyncpa [#allocation6], 1
    %1751 = vsyncpa [#allocation9], 1
    %1752 = vsyncpa [#allocation4], 1
    %s1753 = scalar_lea.sflag [#allocation4], 1
    %1754 = vsyncpa %s1753, 1

</llo_original>
